<compile_context>
chip_gen: v7x
topology: tpu7x:2x2x1
jax: 0.10.0
libtpu: 0.0.40
codegen_flags: <defaults>
</compile_context>

<pallas_src>
import jax
import jax.numpy as jnp
import numpy as np
from jax import lax
from jax.experimental import pallas as pl
from jax.experimental.pallas import tpu as pltpu


def _round_up(v, m):
    return (v + m - 1) // m * m


def gcl_kernel(x_ref, grow_ref, gcol_ref,
               w1a_ref, w1b_ref, b1_ref,
               w2_ref, b2_ref,
               w3h_ref, w3a_ref, b3_ref,
               w4_ref, b4_ref,
               out_ref, agg_ref):
    """One grid step == `gs` graphs of the batch (row-batched node matmuls)."""
    f32, bf16 = jnp.float32, jnp.bfloat16
    gs, n_p, f_p = x_ref.shape
    h_p = w1a_ref.shape[1]
    fo_p = out_ref.shape[-1]

    x2d = x_ref[...].reshape(gs * n_p, f_p)           # [gs*Np, Fp] bf16
    grow = grow_ref[...]                               # [Ep, Np] bf16 (0/1)
    gcol = gcol_ref[...]                               # [Ep, Np] bf16 (0/1)

    # --- edge model, layer 1: node-side projections (row-batched) ------------
    xa = jnp.dot(x2d, w1a_ref[...], preferred_element_type=f32).astype(bf16)
    xb = jnp.dot(x2d, w1b_ref[...], preferred_element_type=f32).astype(bf16)

    for g in range(gs):                                # static unroll, gs small
        lo, hi = g * n_p, (g + 1) * n_p
        # Endpoint gather as two accumulating bf16 MXU matmuls (no concat).
        h1 = (jnp.dot(grow, xa[lo:hi], preferred_element_type=f32)
              + jnp.dot(gcol, xb[lo:hi], preferred_element_type=f32)
              + b1_ref[...])                           # [Ep, Hp] f32
        h1 = jnp.maximum(h1, 0.0)

        # --- edge model, layer 2 ---------------------------------------------
        e = jnp.dot(h1.astype(bf16), w2_ref[...],
                    preferred_element_type=f32) + b2_ref[...]
        e = jnp.maximum(e, 0.0)                        # [Ep, Hp] f32

        # --- segment-sum over the destination node: grow^T @ e ---------------
        # (padded edge rows have all-zero grow rows, so their garbage
        #  activations contribute nothing.)
        agg_ref[lo:hi, :] = lax.dot_general(
            grow, e.astype(bf16),
            dimension_numbers=(((0,), (0,)), ((), ())),
            preferred_element_type=f32)                # [Np, Hp] f32

    # --- node model (row-batched over graphs) ---------------------------------
    h2 = (jnp.dot(x2d, w3h_ref[...], preferred_element_type=f32)
          + jnp.dot(agg_ref[...].astype(bf16), w3a_ref[...],
                    preferred_element_type=f32)
          + b3_ref[...])                               # [gs*Np, Hp] f32
    h2 = jnp.maximum(h2, 0.0)
    out = jnp.dot(h2.astype(bf16), w4_ref[...],
                  preferred_element_type=f32) + b4_ref[...]
    out_ref[...] = out.reshape(gs, n_p, fo_p).astype(out_ref.dtype)


def gcl_forward(x, edge_index, params):
    """Pallas implementation of GCL_basic.forward.

    x:          [B, N, F] float32 node features.
    edge_index: (row, col) int32 arrays of shape [E], shared by every graph in
                the batch (exactly as the PyTorch forward reuses edge_index).
    Returns (xs, None) with xs: [B, N, F_out] float32.
    """
    B, N, F = x.shape
    row, col = edge_index
    E = int(row.shape[0])
    H = params["w2"].shape[0]
    F_out = params["w4"].shape[1]

    bf16 = jnp.bfloat16
    # bf16 vreg is [16, 128]: pad rows to 16, lane dims to 128.
    Np = _round_up(N, 16)
    Ep = _round_up(max(E, 1), 16)          # guard E == 0
    Fp, Hp, Fop = _round_up(F, 128), _round_up(H, 128), _round_up(F_out, 128)

    # Row-batch `gs` graphs per grid step so MXU rows approach 256, but keep
    # at least 2 grid steps so both v7x TensorCores stay busy.
    gs = max(1, min(max(256 // Np, 1), B // 2 if B >= 2 else 1))
    while B % gs:
        gs -= 1
    steps = B // gs

    def pad2(a, r, c):
        return jnp.pad(a, ((0, r - a.shape[0]), (0, c - a.shape[1])))

    # One-hot gather matrices (0/1 is exact in bf16).  Batch-invariant.
    onehot = lambda idx: (idx[:, None] == jnp.arange(N)[None, :]).astype(bf16)
    grow = pad2(onehot(row), Ep, Np)                   # [Ep, Np]
    gcol = pad2(onehot(col), Ep, Np)                   # [Ep, Np]

    x_p = jnp.pad(x, ((0, 0), (0, Np - N), (0, Fp - F))).astype(bf16)

    w1a = pad2(params["w1a"], Fp, Hp).astype(bf16)
    w1b = pad2(params["w1b"], Fp, Hp).astype(bf16)
    b1 = pad2(params["b1"], 1, Hp)
    w2 = pad2(params["w2"], Hp, Hp).astype(bf16)
    b2 = pad2(params["b2"], 1, Hp)
    w3h = pad2(params["w3h"], Fp, Hp).astype(bf16)
    w3a = pad2(params["w3a"], Hp, Hp).astype(bf16)
    b3 = pad2(params["b3"], 1, Hp)
    w4 = pad2(params["w4"], Hp, Fop).astype(bf16)
    b4 = pad2(params["b4"], 1, Fop)

    operands = (x_p, grow, gcol, w1a, w1b, b1, w2, b2, w3h, w3a, b3, w4, b4)

    def const_spec(a):
        nd = a.ndim
        # Constant block index -> single-buffer to halve VMEM footprint.
        return pl.BlockSpec(tuple(a.shape), lambda s, nd=nd: (0,) * nd,
                            pipeline_mode=pl.Buffered(1))

    in_specs = [pl.BlockSpec((gs, Np, Fp), lambda s: (s, 0, 0))]
    in_specs += [const_spec(a) for a in operands[1:]]

    # Derive the VMEM request from the chip instead of hard-coding 64 MiB
    # (v7x only has 64 MiB physical VMEM per TensorCore).
    try:
        vmem_cap = int(pltpu.get_tpu_info().vmem_capacity_bytes)
    except Exception:
        vmem_cap = 128 * 1024 * 1024
    vmem_limit = min(64 * 1024 * 1024, int(vmem_cap * 0.75))

    flops = 2 * B * (2 * Np * Fp * Hp        # x @ W1a, x @ W1b
                     + 2 * Ep * Np * Hp      # endpoint gather (grow, gcol)
                     + Ep * Hp * Hp          # edge MLP layer 2
                     + Ep * Np * Hp          # segment-sum (grow^T @ e)
                     + Np * Fp * Hp          # x @ W3h
                     + Np * Hp * Hp          # agg @ W3a
                     + Np * Hp * Fop)        # node MLP output layer
    bytes_accessed = int(sum(a.size * a.dtype.itemsize for a in operands)
                         + B * Np * Fop * 4)

    out = pl.pallas_call(
        gcl_kernel,
        out_shape=jax.ShapeDtypeStruct((B, Np, Fop), jnp.float32),
        grid=(steps,),
        in_specs=in_specs,
        out_specs=pl.BlockSpec((gs, Np, Fop), lambda s: (s, 0, 0)),
        scratch_shapes=[pltpu.VMEM((gs * Np, Hp), jnp.float32)],
        compiler_params=pltpu.CompilerParams(
            dimension_semantics=("parallel",),
            vmem_limit_bytes=vmem_limit),
        cost_estimate=pl.CostEstimate(flops=flops, transcendentals=0,
                                      bytes_accessed=bytes_accessed),
    )(*operands)
    return out[:, :N, :F_out], None


def reference_forward(x, edge_index, params):
    """Pure-JAX reference mirroring the per-graph PyTorch loop at the kernel's
    precision policy (bf16 matmul operands, f32 accumulation, f32 bias/ReLU,
    f32 segment-sum of bf16 edge features)."""
    row, col = edge_index
    N = x.shape[1]
    bf16, f32 = jnp.bfloat16, jnp.float32

    def dot(a, b):
        return jnp.dot(a.astype(bf16), b.astype(bf16), preferred_element_type=f32)

    def mpnn(h):
        h = h.astype(bf16)
        xa = dot(h, params["w1a"]).astype(bf16)
        xb = dot(h, params["w1b"]).astype(bf16)
        e = jnp.maximum(xa[row].astype(f32) + xb[col].astype(f32)
                        + params["b1"][0], 0.0)
        e = jnp.maximum(dot(e, params["w2"]) + params["b2"][0], 0.0)
        agg = jax.ops.segment_sum(e.astype(bf16).astype(f32), row,
                                  num_segments=N)
        n = jnp.maximum(dot(h, params["w3h"]) + dot(agg, params["w3a"])
                        + params["b3"][0], 0.0)
        return dot(n, params["w4"]) + params["b4"][0]

    return jnp.stack([mpnn(x[i]) for i in range(x.shape[0])]), None


def init_params(key, F, H, F_out):
    ks = jax.random.split(key, 8)
    s = lambda fan_in: 1.0 / np.sqrt(fan_in)
    return {
        "w1a": jax.random.uniform(ks[0], (F, H), jnp.float32, -s(2 * F), s(2 * F)),
        "w1b": jax.random.uniform(ks[1], (F, H), jnp.float32, -s(2 * F), s(2 * F)),
        "b1":  jnp.zeros((1, H), jnp.float32),
        "w2":  jax.random.uniform(ks[2], (H, H), jnp.float32, -s(H), s(H)),
        "b2":  jnp.zeros((1, H), jnp.float32),
        "w3h": jax.random.uniform(ks[3], (F, H), jnp.float32, -s(F + H), s(F + H)),
        "w3a": jax.random.uniform(ks[4], (H, H), jnp.float32, -s(F + H), s(F + H)),
        "b3":  jnp.zeros((1, H), jnp.float32),
        "w4":  jax.random.uniform(ks[5], (H, F_out), jnp.float32, -s(H), s(H)),
        "b4":  jnp.zeros((1, F_out), jnp.float32),
    }


if __name__ == "__main__":
    B, N, F, H = 2, 8, 32, 32
    F_out = 32

    key = jax.random.PRNGKey(0)
    kx, kp = jax.random.split(key)
    x = jax.random.normal(kx, (B, N, F), jnp.float32)

    # Fully connected graph without self-loops; same edge_index for every batch
    # element, matching the PyTorch forward which reuses edge_index per graph.
    rows, cols = np.where(~np.eye(N, dtype=bool))
    edge_index = (jnp.asarray(rows, jnp.int32), jnp.asarray(cols, jnp.int32))

    params = init_params(kp, F, H, F_out)

    xs, edge_none = gcl_forward(x, edge_index, params)
    xs = jax.block_until_ready(xs)

    xs_ref, _ = reference_forward(x, edge_index, params)
    np.testing.assert_allclose(np.asarray(xs), np.asarray(xs_ref),
                               rtol=5e-3, atol=5e-3)
    assert edge_none is None
    print("KERNEL_OK")
</pallas_src>

<mosaic_0001>
module attributes {stable_mosaic.version = 11 : i64} {
  func.func @gcl_kernel(%arg0: i32, %arg1: memref<1x16x128xbf16, #tpu.memory_space<vmem>>, %arg2: memref<64x16xbf16, #tpu.memory_space<vmem>>, %arg3: memref<64x16xbf16, #tpu.memory_space<vmem>>, %arg4: memref<128x128xbf16, #tpu.memory_space<vmem>>, %arg5: memref<128x128xbf16, #tpu.memory_space<vmem>>, %arg6: memref<1x128xf32, #tpu.memory_space<vmem>>, %arg7: memref<128x128xbf16, #tpu.memory_space<vmem>>, %arg8: memref<1x128xf32, #tpu.memory_space<vmem>>, %arg9: memref<128x128xbf16, #tpu.memory_space<vmem>>, %arg10: memref<128x128xbf16, #tpu.memory_space<vmem>>, %arg11: memref<1x128xf32, #tpu.memory_space<vmem>>, %arg12: memref<128x128xbf16, #tpu.memory_space<vmem>>, %arg13: memref<1x128xf32, #tpu.memory_space<vmem>>, %arg14: memref<1x16x128xf32, #tpu.memory_space<vmem>>, %arg15: memref<16x128xf32, #tpu.memory_space<vmem>>) attributes {dimension_semantics = [#tpu.dimension_semantics<parallel>], iteration_bounds = array<i64: 2>, scalar_prefetch = 0 : i64, scratch_operands = 1 : i64, tpu.core_type = #tpu.core_type<tc>, window_params = [{transform_indices = @transform_0, window_bounds = array<i64: 1, 16, 128>}, {pipeline_mode = #tpu.pipeline_mode<synchronous>, transform_indices = @transform_1, window_bounds = array<i64: 64, 16>}, {pipeline_mode = #tpu.pipeline_mode<synchronous>, transform_indices = @transform_2, window_bounds = array<i64: 64, 16>}, {pipeline_mode = #tpu.pipeline_mode<synchronous>, transform_indices = @transform_3, window_bounds = array<i64: 128, 128>}, {pipeline_mode = #tpu.pipeline_mode<synchronous>, transform_indices = @transform_4, window_bounds = array<i64: 128, 128>}, {pipeline_mode = #tpu.pipeline_mode<synchronous>, transform_indices = @transform_5, window_bounds = array<i64: 1, 128>}, {pipeline_mode = #tpu.pipeline_mode<synchronous>, transform_indices = @transform_6, window_bounds = array<i64: 128, 128>}, {pipeline_mode = #tpu.pipeline_mode<synchronous>, transform_indices = @transform_7, window_bounds = array<i64: 1, 128>}, {pipeline_mode = #tpu.pipeline_mode<synchronous>, transform_indices = @transform_8, window_bounds = array<i64: 128, 128>}, {pipeline_mode = #tpu.pipeline_mode<synchronous>, transform_indices = @transform_9, window_bounds = array<i64: 128, 128>}, {pipeline_mode = #tpu.pipeline_mode<synchronous>, transform_indices = @transform_10, window_bounds = array<i64: 1, 128>}, {pipeline_mode = #tpu.pipeline_mode<synchronous>, transform_indices = @transform_11, window_bounds = array<i64: 128, 128>}, {pipeline_mode = #tpu.pipeline_mode<synchronous>, transform_indices = @transform_12, window_bounds = array<i64: 1, 128>}, {transform_indices = @transform_13, window_bounds = array<i64: 1, 16, 128>}]} {
    %c0 = arith.constant 0 : index
    %c0_0 = arith.constant 0 : index
    %c0_1 = arith.constant 0 : index
    %0 = vector.load %arg1[%c0, %c0_0, %c0_1] : memref<1x16x128xbf16, #tpu.memory_space<vmem>>, vector<1x16x128xbf16>
    %1 = vector.shape_cast %0 : vector<1x16x128xbf16> to vector<16x128xbf16>
    %c0_2 = arith.constant 0 : index
    %c0_3 = arith.constant 0 : index
    %2 = vector.load %arg2[%c0_2, %c0_3] : memref<64x16xbf16, #tpu.memory_space<vmem>>, vector<64x16xbf16>
    %c0_4 = arith.constant 0 : index
    %c0_5 = arith.constant 0 : index
    %3 = vector.load %arg3[%c0_4, %c0_5] : memref<64x16xbf16, #tpu.memory_space<vmem>>, vector<64x16xbf16>
    %c0_6 = arith.constant 0 : index
    %c0_7 = arith.constant 0 : index
    %4 = vector.load %arg4[%c0_6, %c0_7] : memref<128x128xbf16, #tpu.memory_space<vmem>>, vector<128x128xbf16>
    %cst = arith.constant dense<0.000000e+00> : vector<16x128xf32>
    %5 = tpu.matmul %1, %4, %cst {dimension_numbers = #tpu.dot_dimension_numbers<[1], [0], [0], [1], [0, 0, 1, 1], [], []>} : vector<16x128xbf16>, vector<128x128xbf16>, vector<16x128xf32> -> vector<16x128xf32>
    %6 = arith.truncf %5 : vector<16x128xf32> to vector<16x128xbf16>
    %c0_8 = arith.constant 0 : index
    %c0_9 = arith.constant 0 : index
    %7 = vector.load %arg5[%c0_8, %c0_9] : memref<128x128xbf16, #tpu.memory_space<vmem>>, vector<128x128xbf16>
    %cst_10 = arith.constant dense<0.000000e+00> : vector<16x128xf32>
    %8 = tpu.matmul %1, %7, %cst_10 {dimension_numbers = #tpu.dot_dimension_numbers<[1], [0], [0], [1], [0, 0, 1, 1], [], []>} : vector<16x128xbf16>, vector<128x128xbf16>, vector<16x128xf32> -> vector<16x128xf32>
    %9 = arith.truncf %8 : vector<16x128xf32> to vector<16x128xbf16>
    %cst_11 = arith.constant dense<0.000000e+00> : vector<64x128xf32>
    %10 = tpu.matmul %2, %6, %cst_11 {dimension_numbers = #tpu.dot_dimension_numbers<[1], [0], [0], [1], [0, 0, 1, 1], [], []>} : vector<64x16xbf16>, vector<16x128xbf16>, vector<64x128xf32> -> vector<64x128xf32>
    %cst_12 = arith.constant dense<0.000000e+00> : vector<64x128xf32>
    %11 = tpu.matmul %3, %9, %cst_12 {dimension_numbers = #tpu.dot_dimension_numbers<[1], [0], [0], [1], [0, 0, 1, 1], [], []>} : vector<64x16xbf16>, vector<16x128xbf16>, vector<64x128xf32> -> vector<64x128xf32>
    %12 = arith.addf %10, %11 : vector<64x128xf32>
    %c0_13 = arith.constant 0 : index
    %c0_14 = arith.constant 0 : index
    %13 = vector.load %arg6[%c0_13, %c0_14] : memref<1x128xf32, #tpu.memory_space<vmem>>, vector<1x128xf32>
    %14 = vector.broadcast %13 : vector<1x128xf32> to vector<64x128xf32>
    %15 = arith.addf %12, %14 : vector<64x128xf32>
    %cst_15 = arith.constant 0.000000e+00 : f32
    %16 = vector.broadcast %cst_15 : f32 to vector<64x128xf32>
    %17 = arith.maximumf %15, %16 : vector<64x128xf32>
    %18 = arith.truncf %17 : vector<64x128xf32> to vector<64x128xbf16>
    %c0_16 = arith.constant 0 : index
    %c0_17 = arith.constant 0 : index
    %19 = vector.load %arg7[%c0_16, %c0_17] : memref<128x128xbf16, #tpu.memory_space<vmem>>, vector<128x128xbf16>
    %cst_18 = arith.constant dense<0.000000e+00> : vector<64x128xf32>
    %20 = tpu.matmul %18, %19, %cst_18 {dimension_numbers = #tpu.dot_dimension_numbers<[1], [0], [0], [1], [0, 0, 1, 1], [], []>} : vector<64x128xbf16>, vector<128x128xbf16>, vector<64x128xf32> -> vector<64x128xf32>
    %c0_19 = arith.constant 0 : index
    %c0_20 = arith.constant 0 : index
    %21 = vector.load %arg8[%c0_19, %c0_20] : memref<1x128xf32, #tpu.memory_space<vmem>>, vector<1x128xf32>
    %22 = vector.broadcast %21 : vector<1x128xf32> to vector<64x128xf32>
    %23 = arith.addf %20, %22 : vector<64x128xf32>
    %cst_21 = arith.constant 0.000000e+00 : f32
    %24 = vector.broadcast %cst_21 : f32 to vector<64x128xf32>
    %25 = arith.maximumf %23, %24 : vector<64x128xf32>
    %26 = arith.truncf %25 : vector<64x128xf32> to vector<64x128xbf16>
    %cst_22 = arith.constant dense<0.000000e+00> : vector<16x128xf32>
    %27 = tpu.matmul %2, %26, %cst_22 {dimension_numbers = #tpu.dot_dimension_numbers<[0], [0], [1], [1], [0, 1, 1, 1], [], []>} : vector<64x16xbf16>, vector<64x128xbf16>, vector<16x128xf32> -> vector<16x128xf32>
    %c0_23 = arith.constant 0 : index
    %c0_24 = arith.constant 0 : index
    %28 = vector.load %arg15[%c0_23, %c0_24] : memref<16x128xf32, #tpu.memory_space<vmem>>, vector<16x128xf32>
    tpu.vector_store %arg15[%c0_23, %c0_24], %27 {strides = array<i32>} : memref<16x128xf32, #tpu.memory_space<vmem>>, vector<16x128xf32>,
    %c0_25 = arith.constant 0 : index
    %c0_26 = arith.constant 0 : index
    %29 = vector.load %arg9[%c0_25, %c0_26] : memref<128x128xbf16, #tpu.memory_space<vmem>>, vector<128x128xbf16>
    %cst_27 = arith.constant dense<0.000000e+00> : vector<16x128xf32>
    %30 = tpu.matmul %1, %29, %cst_27 {dimension_numbers = #tpu.dot_dimension_numbers<[1], [0], [0], [1], [0, 0, 1, 1], [], []>} : vector<16x128xbf16>, vector<128x128xbf16>, vector<16x128xf32> -> vector<16x128xf32>
    %c0_28 = arith.constant 0 : index
    %c0_29 = arith.constant 0 : index
    %31 = vector.load %arg15[%c0_28, %c0_29] : memref<16x128xf32, #tpu.memory_space<vmem>>, vector<16x128xf32>
    %32 = arith.truncf %31 : vector<16x128xf32> to vector<16x128xbf16>
    %c0_30 = arith.constant 0 : index
    %c0_31 = arith.constant 0 : index
    %33 = vector.load %arg10[%c0_30, %c0_31] : memref<128x128xbf16, #tpu.memory_space<vmem>>, vector<128x128xbf16>
    %cst_32 = arith.constant dense<0.000000e+00> : vector<16x128xf32>
    %34 = tpu.matmul %32, %33, %cst_32 {dimension_numbers = #tpu.dot_dimension_numbers<[1], [0], [0], [1], [0, 0, 1, 1], [], []>} : vector<16x128xbf16>, vector<128x128xbf16>, vector<16x128xf32> -> vector<16x128xf32>
    %35 = arith.addf %30, %34 : vector<16x128xf32>
    %c0_33 = arith.constant 0 : index
    %c0_34 = arith.constant 0 : index
    %36 = vector.load %arg11[%c0_33, %c0_34] : memref<1x128xf32, #tpu.memory_space<vmem>>, vector<1x128xf32>
    %37 = vector.broadcast %36 : vector<1x128xf32> to vector<16x128xf32>
    %38 = arith.addf %35, %37 : vector<16x128xf32>
    %cst_35 = arith.constant 0.000000e+00 : f32
    %39 = vector.broadcast %cst_35 : f32 to vector<16x128xf32>
    %40 = arith.maximumf %38, %39 : vector<16x128xf32>
    %41 = arith.truncf %40 : vector<16x128xf32> to vector<16x128xbf16>
    %c0_36 = arith.constant 0 : index
    %c0_37 = arith.constant 0 : index
    %42 = vector.load %arg12[%c0_36, %c0_37] : memref<128x128xbf16, #tpu.memory_space<vmem>>, vector<128x128xbf16>
    %cst_38 = arith.constant dense<0.000000e+00> : vector<16x128xf32>
    %43 = tpu.matmul %41, %42, %cst_38 {dimension_numbers = #tpu.dot_dimension_numbers<[1], [0], [0], [1], [0, 0, 1, 1], [], []>} : vector<16x128xbf16>, vector<128x128xbf16>, vector<16x128xf32> -> vector<16x128xf32>
    %c0_39 = arith.constant 0 : index
    %c0_40 = arith.constant 0 : index
    %44 = vector.load %arg13[%c0_39, %c0_40] : memref<1x128xf32, #tpu.memory_space<vmem>>, vector<1x128xf32>
    %45 = vector.broadcast %44 : vector<1x128xf32> to vector<16x128xf32>
    %46 = arith.addf %43, %45 : vector<16x128xf32>
    %47 = vector.shape_cast %46 : vector<16x128xf32> to vector<1x16x128xf32>
    %c0_41 = arith.constant 0 : index
    %c0_42 = arith.constant 0 : index
    %c0_43 = arith.constant 0 : index
    %48 = vector.load %arg14[%c0_41, %c0_42, %c0_43] : memref<1x16x128xf32, #tpu.memory_space<vmem>>, vector<1x16x128xf32>
    tpu.vector_store %arg14[%c0_41, %c0_42, %c0_43], %47 {strides = array<i32>} : memref<1x16x128xf32, #tpu.memory_space<vmem>>, vector<1x16x128xf32>,
    return
  }
  func.func @transform_0(%arg0: i32) -> (i32, i32, i32) {
    %c0_i32 = arith.constant 0 : i32
    %c0_i32_0 = arith.constant 0 : i32
    %c0_i32_1 = arith.constant 0 : i32
    return %arg0, %c0_i32, %c0_i32_0 : i32, i32, i32
  }
  func.func @transform_1(%arg0: i32) -> (i32, i32) {
    %c0_i32 = arith.constant 0 : i32
    %c0_i32_0 = arith.constant 0 : i32
    %c0_i32_1 = arith.constant 0 : i32
    return %c0_i32, %c0_i32_0 : i32, i32
  }
  func.func @transform_2(%arg0: i32) -> (i32, i32) {
    %c0_i32 = arith.constant 0 : i32
    %c0_i32_0 = arith.constant 0 : i32
    %c0_i32_1 = arith.constant 0 : i32
    return %c0_i32, %c0_i32_0 : i32, i32
  }
  func.func @transform_3(%arg0: i32) -> (i32, i32) {
    %c0_i32 = arith.constant 0 : i32
    %c0_i32_0 = arith.constant 0 : i32
    %c0_i32_1 = arith.constant 0 : i32
    return %c0_i32, %c0_i32_0 : i32, i32
  }
  func.func @transform_4(%arg0: i32) -> (i32, i32) {
    %c0_i32 = arith.constant 0 : i32
    %c0_i32_0 = arith.constant 0 : i32
    %c0_i32_1 = arith.constant 0 : i32
    return %c0_i32, %c0_i32_0 : i32, i32
  }
  func.func @transform_5(%arg0: i32) -> (i32, i32) {
    %c0_i32 = arith.constant 0 : i32
    %c0_i32_0 = arith.constant 0 : i32
    %c0_i32_1 = arith.constant 0 : i32
    return %c0_i32, %c0_i32_0 : i32, i32
  }
  func.func @transform_6(%arg0: i32) -> (i32, i32) {
    %c0_i32 = arith.constant 0 : i32
    %c0_i32_0 = arith.constant 0 : i32
    %c0_i32_1 = arith.constant 0 : i32
    return %c0_i32, %c0_i32_0 : i32, i32
  }
  func.func @transform_7(%arg0: i32) -> (i32, i32) {
    %c0_i32 = arith.constant 0 : i32
    %c0_i32_0 = arith.constant 0 : i32
    %c0_i32_1 = arith.constant 0 : i32
    return %c0_i32, %c0_i32_0 : i32, i32
  }
  func.func @transform_8(%arg0: i32) -> (i32, i32) {
    %c0_i32 = arith.constant 0 : i32
    %c0_i32_0 = arith.constant 0 : i32
    %c0_i32_1 = arith.constant 0 : i32
    return %c0_i32, %c0_i32_0 : i32, i32
  }
  func.func @transform_9(%arg0: i32) -> (i32, i32) {
    %c0_i32 = arith.constant 0 : i32
    %c0_i32_0 = arith.constant 0 : i32
    %c0_i32_1 = arith.constant 0 : i32
    return %c0_i32, %c0_i32_0 : i32, i32
  }
  func.func @transform_10(%arg0: i32) -> (i32, i32) {
    %c0_i32 = arith.constant 0 : i32
    %c0_i32_0 = arith.constant 0 : i32
    %c0_i32_1 = arith.constant 0 : i32
    return %c0_i32, %c0_i32_0 : i32, i32
  }
  func.func @transform_11(%arg0: i32) -> (i32, i32) {
    %c0_i32 = arith.constant 0 : i32
    %c0_i32_0 = arith.constant 0 : i32
    %c0_i32_1 = arith.constant 0 : i32
    return %c0_i32, %c0_i32_0 : i32, i32
  }
  func.func @transform_12(%arg0: i32) -> (i32, i32) {
    %c0_i32 = arith.constant 0 : i32
    %c0_i32_0 = arith.constant 0 : i32
    %c0_i32_1 = arith.constant 0 : i32
    return %c0_i32, %c0_i32_0 : i32, i32
  }
  func.func @transform_13(%arg0: i32) -> (i32, i32, i32) {
    %c0_i32 = arith.constant 0 : i32
    %c0_i32_0 = arith.constant 0 : i32
    %c0_i32_1 = arith.constant 0 : i32
    return %arg0, %c0_i32, %c0_i32_0 : i32, i32, i32
  }
}

</mosaic_0001>

<llo_original>
// kernel: tpu_custom_call.1
$region0: #{tpu_custom_call.1}
  #allocation0 [shape = 'u32[]', space=smem, size = 0x4, offset = 0x4, fixed_abs, tag = 'smem constant byte address 0x4 - core index']
  #allocation1 [shape = 'u32[144,128]{1,0:T(1,128)}', space=vmem, size = 0x12000, scoped, tag = 'internal scratch']
  #allocation2 [shape = 'f32[16,128]{1,0:T(8,128)}', space=vmem, size = 0x2000, scoped, tag = 'scratch operand']
  %s0 = inlined_call_operand.hbm [shape: bf16[2,16,128], index: 0, kind: input, shape index: {}]
  %s1 = inlined_call_operand.hbm [shape: bf16[64,16], index: 1, kind: input, shape index: {}]
  %s2 = inlined_call_operand.hbm [shape: bf16[64,16], index: 2, kind: input, shape index: {}]
  %s3 = inlined_call_operand.hbm [shape: bf16[128,128], index: 3, kind: input, shape index: {}]
  %s4 = inlined_call_operand.hbm [shape: bf16[128,128], index: 4, kind: input, shape index: {}]
  %s5 = inlined_call_operand.hbm [shape: f32[1,128], index: 5, kind: input, shape index: {}]
  %s6 = inlined_call_operand.hbm [shape: bf16[128,128], index: 6, kind: input, shape index: {}]
  %s7 = inlined_call_operand.hbm [shape: f32[1,128], index: 7, kind: input, shape index: {}]
  %s8 = inlined_call_operand.hbm [shape: bf16[128,128], index: 8, kind: input, shape index: {}]
  %s9 = inlined_call_operand.hbm [shape: bf16[128,128], index: 9, kind: input, shape index: {}]
  %s10 = inlined_call_operand.hbm [shape: f32[1,128], index: 10, kind: input, shape index: {}]
  %s11 = inlined_call_operand.hbm [shape: bf16[128,128], index: 11, kind: input, shape index: {}]
  %s12 = inlined_call_operand.hbm [shape: f32[1,128], index: 12, kind: input, shape index: {}]
  %s13 = inlined_call_operand.hbm [shape: f32[2,16,128], index: 13, kind: output, shape index: {}]
  %s14 = sld [smem:[#allocation0]]
  $region137: #{tpu_custom_call.1} parent=0
    _
  %s16 = ssub.s32 1, %s14
  %s17 = scalar_select 0, %s16, %s14
  $region1: #{tpu_custom_call.1} parent=0
    #allocation3 [shape = 'u8[8192]{0}', space=vmem, size = 0x2000, scoped, tag = 'input window, operand 0']
    #allocation4 [shape = 's32[2]{0}', space=sflag, size = 0x8, scoped, tag = 'scoped memory for tpu_custom_call.1']
    #allocation5 [shape = 's32[2]{0}', space=sflag, size = 0x8, scoped, tag = 'scoped memory for tpu_custom_call.1']
    #allocation6 [shape = 'u8[16384]{0}', space=vmem, size = 0x4000, scoped, tag = 'input window, operand 1, single buffered']
    #allocation7 [shape = 's32[1]{0}', space=sflag, size = 0x4, scoped, tag = 'scoped memory for tpu_custom_call.1']
    #allocation8 [shape = 'u8[16384]{0}', space=vmem, size = 0x4000, scoped, tag = 'input window, operand 2, single buffered']
    #allocation9 [shape = 'u8[32768]{0}', space=vmem, size = 0x8000, scoped, tag = 'input window, operand 3, single buffered']
    #allocation10 [shape = 's32[1]{0}', space=sflag, size = 0x4, scoped, tag = 'scoped memory for tpu_custom_call.1']
    #allocation11 [shape = 'u8[32768]{0}', space=vmem, size = 0x8000, scoped, tag = 'input window, operand 4, single buffered']
    #allocation12 [shape = 'u8[512]{0}', space=vmem, size = 0x400, scoped, tag = 'input window, operand 5, single buffered']
    #allocation13 [shape = 's32[1]{0}', space=sflag, size = 0x4, scoped, tag = 'scoped memory for tpu_custom_call.1']
    #allocation14 [shape = 'u8[32768]{0}', space=vmem, size = 0x8000, scoped, tag = 'input window, operand 6, single buffered']
    #allocation15 [shape = 'u8[512]{0}', space=vmem, size = 0x400, scoped, tag = 'input window, operand 7, single buffered']
    #allocation16 [shape = 's32[1]{0}', space=sflag, size = 0x4, scoped, tag = 'scoped memory for tpu_custom_call.1']
    #allocation17 [shape = 'u8[32768]{0}', space=vmem, size = 0x8000, scoped, tag = 'input window, operand 8, single buffered']
    #allocation18 [shape = 'u8[32768]{0}', space=vmem, size = 0x8000, scoped, tag = 'input window, operand 9, single buffered']
    #allocation19 [shape = 's32[1]{0}', space=sflag, size = 0x4, scoped, tag = 'scoped memory for tpu_custom_call.1']
    #allocation20 [shape = 'u8[512]{0}', space=vmem, size = 0x400, scoped, tag = 'input window, operand 10, single buffered']
    #allocation21 [shape = 'u8[32768]{0}', space=vmem, size = 0x8000, scoped, tag = 'input window, operand 11, single buffered']
    #allocation22 [shape = 's32[1]{0}', space=sflag, size = 0x4, scoped, tag = 'scoped memory for tpu_custom_call.1']
    #allocation23 [shape = 'u8[512]{0}', space=vmem, size = 0x400, scoped, tag = 'input window, operand 12, single buffered']
    #allocation24 [shape = 'u8[16384]{0}', space=vmem, size = 0x4000, scoped, tag = 'output window, operand 0']
    %18 = vsyncpa [#allocation4], 0
    %s19 = scalar_lea.sflag [#allocation4], 1
    %20 = vsyncpa %s19, 0
    %21 = vsyncpa [#allocation7], 0
    %22 = vsyncpa [#allocation10], 0
    %23 = vsyncpa [#allocation13], 0
    %24 = vsyncpa [#allocation16], 0
    %25 = vsyncpa [#allocation19], 0
    %26 = vsyncpa [#allocation22], 0
    %27 = vsyncpa [#allocation5], 0
    %s28 = scalar_lea.sflag [#allocation5], 1
    %29 = vsyncpa %s28, 0
    loop: start=0, step=1, limit=4
    $region2: #{tpu_custom_call.1} parent=1 // loop_pre_header
      _
    $region3: #{tpu_custom_call.1} parent=1 // loop_header
      %s31 = sphi 0, %s35
      %p32 = scmp.ge.s32.totalorder %s31, 4
      %s41 = sphi 0, %s43
      %s44 = sphi 0, %s41
      %s45 = sphi 0, %s44
      %s61 = sphi 0, %s45
      %s65 = sphi 0, %s65
      %s67 = sphi 0, %s65
      %s68 = sphi 0, %s67
      %s82 = sphi 0, %s68
      %s86 = sphi 0, %s86
      %s88 = sphi 0, %s86
      %s89 = sphi 0, %s88
      %s103 = sphi 0, %s89
      %s107 = sphi 0, %s107
      %s109 = sphi 0, %s107
      %s110 = sphi 0, %s109
      %s124 = sphi 0, %s110
      %s128 = sphi 0, %s128
      %s130 = sphi 0, %s128
      %s131 = sphi 0, %s130
      %s145 = sphi 0, %s131
      %s149 = sphi 0, %s149
      %s151 = sphi 0, %s149
      %s152 = sphi 0, %s151
      %s166 = sphi 0, %s152
      %s170 = sphi 0, %s170
      %s172 = sphi 0, %s170
      %s173 = sphi 0, %s172
      %s187 = sphi 0, %s173
      %s191 = sphi 0, %s191
      %s193 = sphi 0, %s191
      %s194 = sphi 0, %s193
      %s208 = sphi 0, %s194
      %s212 = sphi 0, %s212
      %s214 = sphi 0, %s212
      %s215 = sphi 0, %s214
      %s229 = sphi 0, %s215
      %s233 = sphi 0, %s233
      %s235 = sphi 0, %s233
      %s236 = sphi 0, %s235
      %s250 = sphi 0, %s236
      %s254 = sphi 0, %s254
      %s256 = sphi 0, %s254
      %s257 = sphi 0, %s256
      %s271 = sphi 0, %s257
      %s275 = sphi 0, %s275
      %s277 = sphi 0, %s275
      %s278 = sphi 0, %s277
      %s292 = sphi 0, %s278
      %s296 = sphi 0, %s296
      %s298 = sphi 0, %s296
      %s299 = sphi 0, %s298
      %s313 = sphi 0, %s299
      %s319 = sphi 0, %s321
      %s322 = sphi 0, %s319
      %s323 = sphi 0, %s322
      %s339 = sphi 0, %s323
    $region4: #{tpu_custom_call.1} parent=1 // loop_header_branch
      %34 = sbr.rel (%p32) target = $region8
    $region5: #{tpu_custom_call.1} parent=1 // loop_body
      %s36 = ssub.s32 %s31, 1
      %s37 = ssub.s32 %s31, 2
      %s38 = sadd.s32 %s31, 1
      %s39 = ssub.s32 %s31, %s38
      %p40 = scmp.eq.s32.totalorder %s39, 0
      %s42 = sadd.s32 %s41, 1
      %s43 = scalar_select %p40, %s41, %s42
      %p46 = pneg %p40
      %p47 = scmp.eq.s32.totalorder %s31, 1
      %p48 = por %p46, %p47
      %p49 = scmp.ne.s32.totalorder %s41, %s44
      %p50 = scmp.eq.s32.totalorder %s31, 0
      %p51 = por %p49, %p50
      %p52 = scmp.ne.s32.totalorder %s41, %s44
      %p53 = scmp.eq.s32.totalorder %s36, 1
      %p54 = por %p52, %p53
      %p55 = scmp.ne.s32.totalorder %s44, %s45
      %p56 = scmp.eq.s32.totalorder %s36, 0
      %p57 = por %p55, %p56
      %p58 = scmp.ne.s32.totalorder %s44, %s45
      %p59 = scmp.eq.s32.totalorder %s37, 1
      %p60 = por %p58, %p59
      %p62 = scmp.ne.s32.totalorder %s45, %s61
      %p63 = scmp.eq.s32.totalorder %s37, 0
      %p64 = por %p62, %p63
      %s66 = sadd.s32 %s65, 1
      %p69 = scmp.eq.s32.totalorder %s31, 1
      %p70 = scmp.ne.s32.totalorder %s65, %s67
      %p71 = scmp.eq.s32.totalorder %s31, 0
      %p72 = por %p70, %p71
      %p73 = scmp.ne.s32.totalorder %s65, %s67
      %p74 = scmp.eq.s32.totalorder %s36, 1
      %p75 = por %p73, %p74
      %p76 = scmp.ne.s32.totalorder %s67, %s68
      %p77 = scmp.eq.s32.totalorder %s36, 0
      %p78 = por %p76, %p77
      %p79 = scmp.ne.s32.totalorder %s67, %s68
      %p80 = scmp.eq.s32.totalorder %s37, 1
      %p81 = por %p79, %p80
      %p83 = scmp.ne.s32.totalorder %s68, %s82
      %p84 = scmp.eq.s32.totalorder %s37, 0
      %p85 = por %p83, %p84
      %s87 = sadd.s32 %s86, 1
      %p90 = scmp.eq.s32.totalorder %s31, 1
      %p91 = scmp.ne.s32.totalorder %s86, %s88
      %p92 = scmp.eq.s32.totalorder %s31, 0
      %p93 = por %p91, %p92
      %p94 = scmp.ne.s32.totalorder %s86, %s88
      %p95 = scmp.eq.s32.totalorder %s36, 1
      %p96 = por %p94, %p95
      %p97 = scmp.ne.s32.totalorder %s88, %s89
      %p98 = scmp.eq.s32.totalorder %s36, 0
      %p99 = por %p97, %p98
      %p100 = scmp.ne.s32.totalorder %s88, %s89
      %p101 = scmp.eq.s32.totalorder %s37, 1
      %p102 = por %p100, %p101
      %p104 = scmp.ne.s32.totalorder %s89, %s103
      %p105 = scmp.eq.s32.totalorder %s37, 0
      %p106 = por %p104, %p105
      %s108 = sadd.s32 %s107, 1
      %p111 = scmp.eq.s32.totalorder %s31, 1
      %p112 = scmp.ne.s32.totalorder %s107, %s109
      %p113 = scmp.eq.s32.totalorder %s31, 0
      %p114 = por %p112, %p113
      %p115 = scmp.ne.s32.totalorder %s107, %s109
      %p116 = scmp.eq.s32.totalorder %s36, 1
      %p117 = por %p115, %p116
      %p118 = scmp.ne.s32.totalorder %s109, %s110
      %p119 = scmp.eq.s32.totalorder %s36, 0
      %p120 = por %p118, %p119
      %p121 = scmp.ne.s32.totalorder %s109, %s110
      %p122 = scmp.eq.s32.totalorder %s37, 1
      %p123 = por %p121, %p122
      %p125 = scmp.ne.s32.totalorder %s110, %s124
      %p126 = scmp.eq.s32.totalorder %s37, 0
      %p127 = por %p125, %p126
      %s129 = sadd.s32 %s128, 1
      %p132 = scmp.eq.s32.totalorder %s31, 1
      %p133 = scmp.ne.s32.totalorder %s128, %s130
      %p134 = scmp.eq.s32.totalorder %s31, 0
      %p135 = por %p133, %p134
      %p136 = scmp.ne.s32.totalorder %s128, %s130
      %p137 = scmp.eq.s32.totalorder %s36, 1
      %p138 = por %p136, %p137
      %p139 = scmp.ne.s32.totalorder %s130, %s131
      %p140 = scmp.eq.s32.totalorder %s36, 0
      %p141 = por %p139, %p140
      %p142 = scmp.ne.s32.totalorder %s130, %s131
      %p143 = scmp.eq.s32.totalorder %s37, 1
      %p144 = por %p142, %p143
      %p146 = scmp.ne.s32.totalorder %s131, %s145
      %p147 = scmp.eq.s32.totalorder %s37, 0
      %p148 = por %p146, %p147
      %s150 = sadd.s32 %s149, 1
      %p153 = scmp.eq.s32.totalorder %s31, 1
      %p154 = scmp.ne.s32.totalorder %s149, %s151
      %p155 = scmp.eq.s32.totalorder %s31, 0
      %p156 = por %p154, %p155
      %p157 = scmp.ne.s32.totalorder %s149, %s151
      %p158 = scmp.eq.s32.totalorder %s36, 1
      %p159 = por %p157, %p158
      %p160 = scmp.ne.s32.totalorder %s151, %s152
      %p161 = scmp.eq.s32.totalorder %s36, 0
      %p162 = por %p160, %p161
      %p163 = scmp.ne.s32.totalorder %s151, %s152
      %p164 = scmp.eq.s32.totalorder %s37, 1
      %p165 = por %p163, %p164
      %p167 = scmp.ne.s32.totalorder %s152, %s166
      %p168 = scmp.eq.s32.totalorder %s37, 0
      %p169 = por %p167, %p168
      %s171 = sadd.s32 %s170, 1
      %p174 = scmp.eq.s32.totalorder %s31, 1
      %p175 = scmp.ne.s32.totalorder %s170, %s172
      %p176 = scmp.eq.s32.totalorder %s31, 0
      %p177 = por %p175, %p176
      %p178 = scmp.ne.s32.totalorder %s170, %s172
      %p179 = scmp.eq.s32.totalorder %s36, 1
      %p180 = por %p178, %p179
      %p181 = scmp.ne.s32.totalorder %s172, %s173
      %p182 = scmp.eq.s32.totalorder %s36, 0
      %p183 = por %p181, %p182
      %p184 = scmp.ne.s32.totalorder %s172, %s173
      %p185 = scmp.eq.s32.totalorder %s37, 1
      %p186 = por %p184, %p185
      %p188 = scmp.ne.s32.totalorder %s173, %s187
      %p189 = scmp.eq.s32.totalorder %s37, 0
      %p190 = por %p188, %p189
      %s192 = sadd.s32 %s191, 1
      %p195 = scmp.eq.s32.totalorder %s31, 1
      %p196 = scmp.ne.s32.totalorder %s191, %s193
      %p197 = scmp.eq.s32.totalorder %s31, 0
      %p198 = por %p196, %p197
      %p199 = scmp.ne.s32.totalorder %s191, %s193
      %p200 = scmp.eq.s32.totalorder %s36, 1
      %p201 = por %p199, %p200
      %p202 = scmp.ne.s32.totalorder %s193, %s194
      %p203 = scmp.eq.s32.totalorder %s36, 0
      %p204 = por %p202, %p203
      %p205 = scmp.ne.s32.totalorder %s193, %s194
      %p206 = scmp.eq.s32.totalorder %s37, 1
      %p207 = por %p205, %p206
      %p209 = scmp.ne.s32.totalorder %s194, %s208
      %p210 = scmp.eq.s32.totalorder %s37, 0
      %p211 = por %p209, %p210
      %s213 = sadd.s32 %s212, 1
      %p216 = scmp.eq.s32.totalorder %s31, 1
      %p217 = scmp.ne.s32.totalorder %s212, %s214
      %p218 = scmp.eq.s32.totalorder %s31, 0
      %p219 = por %p217, %p218
      %p220 = scmp.ne.s32.totalorder %s212, %s214
      %p221 = scmp.eq.s32.totalorder %s36, 1
      %p222 = por %p220, %p221
      %p223 = scmp.ne.s32.totalorder %s214, %s215
      %p224 = scmp.eq.s32.totalorder %s36, 0
      %p225 = por %p223, %p224
      %p226 = scmp.ne.s32.totalorder %s214, %s215
      %p227 = scmp.eq.s32.totalorder %s37, 1
      %p228 = por %p226, %p227
      %p230 = scmp.ne.s32.totalorder %s215, %s229
      %p231 = scmp.eq.s32.totalorder %s37, 0
      %p232 = por %p230, %p231
      %s234 = sadd.s32 %s233, 1
      %p237 = scmp.eq.s32.totalorder %s31, 1
      %p238 = scmp.ne.s32.totalorder %s233, %s235
      %p239 = scmp.eq.s32.totalorder %s31, 0
      %p240 = por %p238, %p239
      %p241 = scmp.ne.s32.totalorder %s233, %s235
      %p242 = scmp.eq.s32.totalorder %s36, 1
      %p243 = por %p241, %p242
      %p244 = scmp.ne.s32.totalorder %s235, %s236
      %p245 = scmp.eq.s32.totalorder %s36, 0
      %p246 = por %p244, %p245
      %p247 = scmp.ne.s32.totalorder %s235, %s236
      %p248 = scmp.eq.s32.totalorder %s37, 1
      %p249 = por %p247, %p248
      %p251 = scmp.ne.s32.totalorder %s236, %s250
      %p252 = scmp.eq.s32.totalorder %s37, 0
      %p253 = por %p251, %p252
      %s255 = sadd.s32 %s254, 1
      %p258 = scmp.eq.s32.totalorder %s31, 1
      %p259 = scmp.ne.s32.totalorder %s254, %s256
      %p260 = scmp.eq.s32.totalorder %s31, 0
      %p261 = por %p259, %p260
      %p262 = scmp.ne.s32.totalorder %s254, %s256
      %p263 = scmp.eq.s32.totalorder %s36, 1
      %p264 = por %p262, %p263
      %p265 = scmp.ne.s32.totalorder %s256, %s257
      %p266 = scmp.eq.s32.totalorder %s36, 0
      %p267 = por %p265, %p266
      %p268 = scmp.ne.s32.totalorder %s256, %s257
      %p269 = scmp.eq.s32.totalorder %s37, 1
      %p270 = por %p268, %p269
      %p272 = scmp.ne.s32.totalorder %s257, %s271
      %p273 = scmp.eq.s32.totalorder %s37, 0
      %p274 = por %p272, %p273
      %s276 = sadd.s32 %s275, 1
      %p279 = scmp.eq.s32.totalorder %s31, 1
      %p280 = scmp.ne.s32.totalorder %s275, %s277
      %p281 = scmp.eq.s32.totalorder %s31, 0
      %p282 = por %p280, %p281
      %p283 = scmp.ne.s32.totalorder %s275, %s277
      %p284 = scmp.eq.s32.totalorder %s36, 1
      %p285 = por %p283, %p284
      %p286 = scmp.ne.s32.totalorder %s277, %s278
      %p287 = scmp.eq.s32.totalorder %s36, 0
      %p288 = por %p286, %p287
      %p289 = scmp.ne.s32.totalorder %s277, %s278
      %p290 = scmp.eq.s32.totalorder %s37, 1
      %p291 = por %p289, %p290
      %p293 = scmp.ne.s32.totalorder %s278, %s292
      %p294 = scmp.eq.s32.totalorder %s37, 0
      %p295 = por %p293, %p294
      %s297 = sadd.s32 %s296, 1
      %p300 = scmp.eq.s32.totalorder %s31, 1
      %p301 = scmp.ne.s32.totalorder %s296, %s298
      %p302 = scmp.eq.s32.totalorder %s31, 0
      %p303 = por %p301, %p302
      %p304 = scmp.ne.s32.totalorder %s296, %s298
      %p305 = scmp.eq.s32.totalorder %s36, 1
      %p306 = por %p304, %p305
      %p307 = scmp.ne.s32.totalorder %s298, %s299
      %p308 = scmp.eq.s32.totalorder %s36, 0
      %p309 = por %p307, %p308
      %p310 = scmp.ne.s32.totalorder %s298, %s299
      %p311 = scmp.eq.s32.totalorder %s37, 1
      %p312 = por %p310, %p311
      %p314 = scmp.ne.s32.totalorder %s299, %s313
      %p315 = scmp.eq.s32.totalorder %s37, 0
      %p316 = por %p314, %p315
      %s317 = ssub.s32 %s31, %s38
      %p318 = scmp.eq.s32.totalorder %s317, 0
      %s320 = sadd.s32 %s319, 1
      %s321 = scalar_select %p318, %s319, %s320
      %p324 = pneg %p318
      %p325 = scmp.eq.s32.totalorder %s31, 1
      %p326 = por %p324, %p325
      %p327 = scmp.ne.s32.totalorder %s319, %s322
      %p328 = scmp.eq.s32.totalorder %s31, 0
      %p329 = por %p327, %p328
      %p330 = scmp.ne.s32.totalorder %s319, %s322
      %p331 = scmp.eq.s32.totalorder %s36, 1
      %p332 = por %p330, %p331
      %p333 = scmp.ne.s32.totalorder %s322, %s323
      %p334 = scmp.eq.s32.totalorder %s36, 0
      %p335 = por %p333, %p334
      %p336 = scmp.ne.s32.totalorder %s322, %s323
      %p337 = scmp.eq.s32.totalorder %s37, 1
      %p338 = por %p336, %p337
      %p340 = scmp.ne.s32.totalorder %s323, %s339
      %p341 = scmp.eq.s32.totalorder %s37, 0
      %p342 = por %p340, %p341
      %p343 = scmp.le.s32.totalorder 1, %s31
      %p344 = scmp.lt.s32.totalorder %s31, 3
      %p345 = pnand %p343, %p344
      %p346 = pneg %p345
      // Predicated region
      $region9: #{tpu_custom_call.1} parent=5 // pred_check
        _
      $region10: #{tpu_custom_call.1} parent=5 // pred_check_branch
        %348 = sbr.rel (%p345) target = $region12
      $region11: #{tpu_custom_call.1} parent=5 // pred_region
        %s349 = ssub.s32 %s31, 1
        // Predicated region
        $region13: #{tpu_custom_call.1} parent=11 // pred_check
          %p350 = pneg %p78
        $region14: #{tpu_custom_call.1} parent=11 // pred_check_branch
          %352 = sbr.rel (%p350) target = $region16
        $region15: #{tpu_custom_call.1} parent=11 // pred_region
          %s354 = ssub.s32 512, 512
          %355 = vsyncadd [#allocation7], %s354
          %s356 = sshll.u32 [#allocation6], 4
          %s357 = int_to_ptr.vmem [resolvable:$true] %s356
          %362 = dma.hbm_to_vmem [thread:$0]  %s1, 512, %s357, [#allocation7], 64, 64, 4
        $region16: #{tpu_custom_call.1} parent=11 // pred_fallthru
          _
        // Predicated region
        $region17: #{tpu_custom_call.1} parent=11 // pred_check
          %p363 = pneg %p99
        $region18: #{tpu_custom_call.1} parent=11 // pred_check_branch
          %365 = sbr.rel (%p363) target = $region20
        $region19: #{tpu_custom_call.1} parent=11 // pred_region
          %s367 = ssub.s32 512, 512
          %368 = vsyncadd [#allocation7], %s367
          %s369 = sshll.u32 [#allocation8], 4
          %s370 = int_to_ptr.vmem [resolvable:$true] %s369
          %375 = dma.hbm_to_vmem [thread:$0]  %s2, 512, %s370, [#allocation7], 64, 64, 4
        $region20: #{tpu_custom_call.1} parent=11 // pred_fallthru
          _
        // Predicated region
        $region21: #{tpu_custom_call.1} parent=11 // pred_check
          %p376 = pneg %p120
        $region22: #{tpu_custom_call.1} parent=11 // pred_check_branch
          %378 = sbr.rel (%p376) target = $region24
        $region23: #{tpu_custom_call.1} parent=11 // pred_region
          %s380 = ssub.s32 1024, 1024
          %381 = vsyncadd [#allocation10], %s380
          %s382 = sshll.u32 [#allocation9], 4
          %s383 = int_to_ptr.vmem [resolvable:$true] %s382
          %388 = dma.hbm_to_vmem [thread:$0]  %s3, 1024, %s383, [#allocation10], 64, 64, 4
        $region24: #{tpu_custom_call.1} parent=11 // pred_fallthru
          _
        // Predicated region
        $region25: #{tpu_custom_call.1} parent=11 // pred_check
          %p389 = pneg %p141
        $region26: #{tpu_custom_call.1} parent=11 // pred_check_branch
          %391 = sbr.rel (%p389) target = $region28
        $region27: #{tpu_custom_call.1} parent=11 // pred_region
          %s393 = ssub.s32 1024, 1024
          %394 = vsyncadd [#allocation10], %s393
          %s395 = sshll.u32 [#allocation11], 4
          %s396 = int_to_ptr.vmem [resolvable:$true] %s395
          %401 = dma.hbm_to_vmem [thread:$0]  %s4, 1024, %s396, [#allocation10], 64, 64, 4
        $region28: #{tpu_custom_call.1} parent=11 // pred_fallthru
          _
        // Predicated region
        $region29: #{tpu_custom_call.1} parent=11 // pred_check
          %p402 = pneg %p162
        $region30: #{tpu_custom_call.1} parent=11 // pred_check_branch
          %404 = sbr.rel (%p402) target = $region32
        $region31: #{tpu_custom_call.1} parent=11 // pred_region
          %s406 = ssub.s32 16, 16
          %407 = vsyncadd [#allocation13], %s406
          %s409 = sshll.u32 [#allocation12], 4
          %s410 = int_to_ptr.vmem [resolvable:$true] %s409
          %412 = dma.hbm_to_vmem [thread:$0]  %s5, 16, %s410, [#allocation13]
        $region32: #{tpu_custom_call.1} parent=11 // pred_fallthru
          _
        // Predicated region
        $region33: #{tpu_custom_call.1} parent=11 // pred_check
          %p413 = pneg %p183
        $region34: #{tpu_custom_call.1} parent=11 // pred_check_branch
          %415 = sbr.rel (%p413) target = $region36
        $region35: #{tpu_custom_call.1} parent=11 // pred_region
          %s417 = ssub.s32 1024, 1024
          %418 = vsyncadd [#allocation13], %s417
          %s419 = sshll.u32 [#allocation14], 4
          %s420 = int_to_ptr.vmem [resolvable:$true] %s419
          %425 = dma.hbm_to_vmem [thread:$0]  %s6, 1024, %s420, [#allocation13], 64, 64, 4
        $region36: #{tpu_custom_call.1} parent=11 // pred_fallthru
          _
        // Predicated region
        $region37: #{tpu_custom_call.1} parent=11 // pred_check
          %p426 = pneg %p204
        $region38: #{tpu_custom_call.1} parent=11 // pred_check_branch
          %428 = sbr.rel (%p426) target = $region40
        $region39: #{tpu_custom_call.1} parent=11 // pred_region
          %s430 = ssub.s32 16, 16
          %431 = vsyncadd [#allocation16], %s430
          %s433 = sshll.u32 [#allocation15], 4
          %s434 = int_to_ptr.vmem [resolvable:$true] %s433
          %436 = dma.hbm_to_vmem [thread:$0]  %s7, 16, %s434, [#allocation16]
        $region40: #{tpu_custom_call.1} parent=11 // pred_fallthru
          _
        // Predicated region
        $region41: #{tpu_custom_call.1} parent=11 // pred_check
          %p437 = pneg %p225
        $region42: #{tpu_custom_call.1} parent=11 // pred_check_branch
          %439 = sbr.rel (%p437) target = $region44
        $region43: #{tpu_custom_call.1} parent=11 // pred_region
          %s441 = ssub.s32 1024, 1024
          %442 = vsyncadd [#allocation16], %s441
          %s443 = sshll.u32 [#allocation17], 4
          %s444 = int_to_ptr.vmem [resolvable:$true] %s443
          %449 = dma.hbm_to_vmem [thread:$0]  %s8, 1024, %s444, [#allocation16], 64, 64, 4
        $region44: #{tpu_custom_call.1} parent=11 // pred_fallthru
          _
        // Predicated region
        $region45: #{tpu_custom_call.1} parent=11 // pred_check
          %p450 = pneg %p246
        $region46: #{tpu_custom_call.1} parent=11 // pred_check_branch
          %452 = sbr.rel (%p450) target = $region48
        $region47: #{tpu_custom_call.1} parent=11 // pred_region
          %s454 = ssub.s32 1024, 1024
          %455 = vsyncadd [#allocation19], %s454
          %s456 = sshll.u32 [#allocation18], 4
          %s457 = int_to_ptr.vmem [resolvable:$true] %s456
          %462 = dma.hbm_to_vmem [thread:$0]  %s9, 1024, %s457, [#allocation19], 64, 64, 4
        $region48: #{tpu_custom_call.1} parent=11 // pred_fallthru
          _
        // Predicated region
        $region49: #{tpu_custom_call.1} parent=11 // pred_check
          %p463 = pneg %p267
        $region50: #{tpu_custom_call.1} parent=11 // pred_check_branch
          %465 = sbr.rel (%p463) target = $region52
        $region51: #{tpu_custom_call.1} parent=11 // pred_region
          %s467 = ssub.s32 16, 16
          %468 = vsyncadd [#allocation19], %s467
          %s470 = sshll.u32 [#allocation20], 4
          %s471 = int_to_ptr.vmem [resolvable:$true] %s470
          %473 = dma.hbm_to_vmem [thread:$0]  %s10, 16, %s471, [#allocation19]
        $region52: #{tpu_custom_call.1} parent=11 // pred_fallthru
          _
        // Predicated region
        $region53: #{tpu_custom_call.1} parent=11 // pred_check
          %p474 = pneg %p288
        $region54: #{tpu_custom_call.1} parent=11 // pred_check_branch
          %476 = sbr.rel (%p474) target = $region56
        $region55: #{tpu_custom_call.1} parent=11 // pred_region
          %s478 = ssub.s32 1024, 1024
          %479 = vsyncadd [#allocation22], %s478
          %s480 = sshll.u32 [#allocation21], 4
          %s481 = int_to_ptr.vmem [resolvable:$true] %s480
          %486 = dma.hbm_to_vmem [thread:$0]  %s11, 1024, %s481, [#allocation22], 64, 64, 4
        $region56: #{tpu_custom_call.1} parent=11 // pred_fallthru
          _
        // Predicated region
        $region57: #{tpu_custom_call.1} parent=11 // pred_check
          %p487 = pneg %p309
        $region58: #{tpu_custom_call.1} parent=11 // pred_check_branch
          %489 = sbr.rel (%p487) target = $region60
        $region59: #{tpu_custom_call.1} parent=11 // pred_region
          %s491 = ssub.s32 16, 16
          %492 = vsyncadd [#allocation22], %s491
          %s494 = sshll.u32 [#allocation23], 4
          %s495 = int_to_ptr.vmem [resolvable:$true] %s494
          %497 = dma.hbm_to_vmem [thread:$0]  %s12, 16, %s495, [#allocation22]
        $region60: #{tpu_custom_call.1} parent=11 // pred_fallthru
          _
      $region12: #{tpu_custom_call.1} parent=5 // pred_fallthru
        _
      %p498 = scmp.lt.s32.totalorder %s31, 2
      // Predicated region
      $region61: #{tpu_custom_call.1} parent=5 // pred_check
        %p499 = pneg %p498
      $region62: #{tpu_custom_call.1} parent=5 // pred_check_branch
        %501 = sbr.rel (%p499) target = $region64
      $region63: #{tpu_custom_call.1} parent=5 // pred_region
        // Predicated region
        $region65: #{tpu_custom_call.1} parent=63 // pred_check
          %p502 = pneg %p51
        $region66: #{tpu_custom_call.1} parent=63 // pred_check_branch
          %504 = sbr.rel (%p502) target = $region68
        $region67: #{tpu_custom_call.1} parent=63 // pred_region
          %s505 = sand.u32 %s41, 1
          %s506 = scalar_lea.sflag [#allocation4], %s505
          %s507 = sand.u32 %s41, 1
          %s508 = smul.addr %s507, 8
          %s509 = scalar_lea.vmem [#allocation3], %s508
          %s511 = ssub.s32 128, 128
          %512 = vsyncadd %s506, %s511
          %s513 = smul.addr %s31, 2
          %s514 = smul.addr %s513, 64
          %s515 = scalar_lea.hbm %s0, %s514
          %s516 = sshll.u32 %s509, 4
          %s517 = int_to_ptr.vmem [resolvable:$true] %s516
          %522 = dma.hbm_to_vmem [thread:$0]  %s515, 128, %s517, %s506, 64, 64, 4
        $region68: #{tpu_custom_call.1} parent=63 // pred_fallthru
          _
      $region64: #{tpu_custom_call.1} parent=5 // pred_fallthru
        _
      %p523 = scmp.le.s32.totalorder 1, %s31
      %p524 = scmp.lt.s32.totalorder %s31, 3
      %p525 = pnand %p523, %p524
      %p526 = pneg %p525
      // Predicated region
      $region69: #{tpu_custom_call.1} parent=5 // pred_check
        _
      $region70: #{tpu_custom_call.1} parent=5 // pred_check_branch
        %528 = sbr.rel (%p525) target = $region72
      $region71: #{tpu_custom_call.1} parent=5 // pred_region
        %s529 = ssub.s32 %s31, 1
        %s530 = sand.u32 %s44, 1
        %s531 = scalar_lea.sflag [#allocation4], %s530
        %s532 = sand.u32 %s44, 1
        %s533 = smul.addr %s532, 8
        %s534 = scalar_lea.vmem [#allocation3], %s533
        // Predicated region
        $region73: #{tpu_custom_call.1} parent=71 // pred_check
          %p535 = pneg %p57
        $region74: #{tpu_custom_call.1} parent=71 // pred_check_branch
          %537 = sbr.rel (%p535) target = $region76
        $region75: #{tpu_custom_call.1} parent=71 // pred_region
          %538 = dma.done %s531, 128
        $region76: #{tpu_custom_call.1} parent=71 // pred_fallthru
          _
        // Predicated region
        $region77: #{tpu_custom_call.1} parent=71 // pred_check
          %p539 = pneg %p78
        $region78: #{tpu_custom_call.1} parent=71 // pred_check_branch
          %541 = sbr.rel (%p539) target = $region80
        $region79: #{tpu_custom_call.1} parent=71 // pred_region
          %542 = dma.done [#allocation7], 512
        $region80: #{tpu_custom_call.1} parent=71 // pred_fallthru
          _
        // Predicated region
        $region81: #{tpu_custom_call.1} parent=71 // pred_check
          %p543 = pneg %p99
        $region82: #{tpu_custom_call.1} parent=71 // pred_check_branch
          %545 = sbr.rel (%p543) target = $region84
        $region83: #{tpu_custom_call.1} parent=71 // pred_region
          %546 = dma.done [#allocation7], 512
        $region84: #{tpu_custom_call.1} parent=71 // pred_fallthru
          _
        // Predicated region
        $region85: #{tpu_custom_call.1} parent=71 // pred_check
          %p547 = pneg %p120
        $region86: #{tpu_custom_call.1} parent=71 // pred_check_branch
          %549 = sbr.rel (%p547) target = $region88
        $region87: #{tpu_custom_call.1} parent=71 // pred_region
          %550 = dma.done [#allocation10], 1024
        $region88: #{tpu_custom_call.1} parent=71 // pred_fallthru
          _
        // Predicated region
        $region89: #{tpu_custom_call.1} parent=71 // pred_check
          %p551 = pneg %p141
        $region90: #{tpu_custom_call.1} parent=71 // pred_check_branch
          %553 = sbr.rel (%p551) target = $region92
        $region91: #{tpu_custom_call.1} parent=71 // pred_region
          %554 = dma.done [#allocation10], 1024
        $region92: #{tpu_custom_call.1} parent=71 // pred_fallthru
          _
        // Predicated region
        $region93: #{tpu_custom_call.1} parent=71 // pred_check
          %p555 = pneg %p162
        $region94: #{tpu_custom_call.1} parent=71 // pred_check_branch
          %557 = sbr.rel (%p555) target = $region96
        $region95: #{tpu_custom_call.1} parent=71 // pred_region
          %558 = dma.done [#allocation13], 16
        $region96: #{tpu_custom_call.1} parent=71 // pred_fallthru
          _
        // Predicated region
        $region97: #{tpu_custom_call.1} parent=71 // pred_check
          %p559 = pneg %p183
        $region98: #{tpu_custom_call.1} parent=71 // pred_check_branch
          %561 = sbr.rel (%p559) target = $region100
        $region99: #{tpu_custom_call.1} parent=71 // pred_region
          %562 = dma.done [#allocation13], 1024
        $region100: #{tpu_custom_call.1} parent=71 // pred_fallthru
          _
        // Predicated region
        $region101: #{tpu_custom_call.1} parent=71 // pred_check
          %p563 = pneg %p204
        $region102: #{tpu_custom_call.1} parent=71 // pred_check_branch
          %565 = sbr.rel (%p563) target = $region104
        $region103: #{tpu_custom_call.1} parent=71 // pred_region
          %566 = dma.done [#allocation16], 16
        $region104: #{tpu_custom_call.1} parent=71 // pred_fallthru
          _
        // Predicated region
        $region105: #{tpu_custom_call.1} parent=71 // pred_check
          %p567 = pneg %p225
        $region106: #{tpu_custom_call.1} parent=71 // pred_check_branch
          %569 = sbr.rel (%p567) target = $region108
        $region107: #{tpu_custom_call.1} parent=71 // pred_region
          %570 = dma.done [#allocation16], 1024
        $region108: #{tpu_custom_call.1} parent=71 // pred_fallthru
          _
        // Predicated region
        $region109: #{tpu_custom_call.1} parent=71 // pred_check
          %p571 = pneg %p246
        $region110: #{tpu_custom_call.1} parent=71 // pred_check_branch
          %573 = sbr.rel (%p571) target = $region112
        $region111: #{tpu_custom_call.1} parent=71 // pred_region
          %574 = dma.done [#allocation19], 1024
        $region112: #{tpu_custom_call.1} parent=71 // pred_fallthru
          _
        // Predicated region
        $region113: #{tpu_custom_call.1} parent=71 // pred_check
          %p575 = pneg %p267
        $region114: #{tpu_custom_call.1} parent=71 // pred_check_branch
          %577 = sbr.rel (%p575) target = $region116
        $region115: #{tpu_custom_call.1} parent=71 // pred_region
          %578 = dma.done [#allocation19], 16
        $region116: #{tpu_custom_call.1} parent=71 // pred_fallthru
          _
        // Predicated region
        $region117: #{tpu_custom_call.1} parent=71 // pred_check
          %p579 = pneg %p288
        $region118: #{tpu_custom_call.1} parent=71 // pred_check_branch
          %581 = sbr.rel (%p579) target = $region120
        $region119: #{tpu_custom_call.1} parent=71 // pred_region
          %582 = dma.done [#allocation22], 1024
        $region120: #{tpu_custom_call.1} parent=71 // pred_fallthru
          _
        // Predicated region
        $region121: #{tpu_custom_call.1} parent=71 // pred_check
          %p583 = pneg %p309
        $region122: #{tpu_custom_call.1} parent=71 // pred_check_branch
          %585 = sbr.rel (%p583) target = $region124
        $region123: #{tpu_custom_call.1} parent=71 // pred_region
          %586 = dma.done [#allocation22], 16
        $region124: #{tpu_custom_call.1} parent=71 // pred_fallthru
          _
        %s587 = sand.u32 %s44, 1
        %s588 = scalar_lea.sflag [#allocation4], %s587
        %s589 = sand.u32 %s44, 1
        %s590 = smul.addr %s589, 8
        %s591 = scalar_lea.vmem [#allocation3], %s590
        %p592 = pneg %p57
        %p593 = pneg %p54
        %p594 = pneg %p78
        %p595 = pneg %p75
        %p596 = pneg %p99
        %p597 = pneg %p96
        %p598 = pneg %p120
        %p599 = pneg %p117
        %p600 = pneg %p141
        %p601 = pneg %p138
        %p602 = pneg %p162
        %p603 = pneg %p159
        %p604 = pneg %p183
        %p605 = pneg %p180
        %p606 = pneg %p204
        %p607 = pneg %p201
        %p608 = pneg %p225
        %p609 = pneg %p222
        %p610 = pneg %p246
        %p611 = pneg %p243
        %p612 = pneg %p267
        %p613 = pneg %p264
        %p614 = pneg %p288
        %p615 = pneg %p285
        %p616 = pneg %p309
        %p617 = pneg %p306
        %p618 = pneg %p335
        %p619 = pneg %p332
        %s620 = sand.u32 %s322, 1
        %s621 = scalar_lea.sflag [#allocation5], %s620
        %s622 = sand.u32 %s322, 1
        %s623 = smul.addr %s622, 16
        %s624 = scalar_lea.vmem [#allocation24], %s623
        %v626 = vld [vmem:[%s534] sm:$0xf]
        %v627 = vld [vmem:[%s534 + $0x4] sm:$0xf]
        %v628 = vld [vmem:[#allocation6] sm:$0xf]
        %v629 = vld [vmem:[#allocation6 + $0x4] sm:$0xf]
        %v630 = vld [vmem:[#allocation6 + $0x8] sm:$0xf]
        %v631 = vld [vmem:[#allocation6 + $0xc] sm:$0xf]
        %v632 = vld [vmem:[#allocation6 + $0x10] sm:$0xf]
        %v633 = vld [vmem:[#allocation6 + $0x14] sm:$0xf]
        %v634 = vld [vmem:[#allocation6 + $0x18] sm:$0xf]
        %v635 = vld [vmem:[#allocation6 + $0x1c] sm:$0xf]
        %v636 = vld [vmem:[#allocation8] sm:$0xf]
        %v637 = vld [vmem:[#allocation8 + $0x4] sm:$0xf]
        %v638 = vld [vmem:[#allocation8 + $0x8] sm:$0xf]
        %v639 = vld [vmem:[#allocation8 + $0xc] sm:$0xf]
        %v640 = vld [vmem:[#allocation8 + $0x10] sm:$0xf]
        %v641 = vld [vmem:[#allocation8 + $0x14] sm:$0xf]
        %v642 = vld [vmem:[#allocation8 + $0x18] sm:$0xf]
        %v643 = vld [vmem:[#allocation8 + $0x1c] sm:$0xf]
        %v644 = vld [vmem:[#allocation9] sm:$0xf]
        %v645 = vld [vmem:[#allocation9 + $0x4] sm:$0xf]
        %v646 = vld [vmem:[#allocation9 + $0x8] sm:$0xf]
        %v647 = vld [vmem:[#allocation9 + $0xc] sm:$0xf]
        %v648 = vld [vmem:[#allocation9 + $0x10] sm:$0xf]
        %v649 = vld [vmem:[#allocation9 + $0x14] sm:$0xf]
        %v650 = vld [vmem:[#allocation9 + $0x18] sm:$0xf]
        %v651 = vld [vmem:[#allocation9 + $0x1c] sm:$0xf]
        %v652 = vld [vmem:[#allocation9 + $0x20] sm:$0xf]
        %v653 = vld [vmem:[#allocation9 + $0x24] sm:$0xf]
        %v654 = vld [vmem:[#allocation9 + $0x28] sm:$0xf]
        %v655 = vld [vmem:[#allocation9 + $0x2c] sm:$0xf]
        %v656 = vld [vmem:[#allocation9 + $0x30] sm:$0xf]
        %v657 = vld [vmem:[#allocation9 + $0x34] sm:$0xf]
        %v658 = vld [vmem:[#allocation9 + $0x38] sm:$0xf]
        %v659 = vld [vmem:[#allocation9 + $0x3c] sm:$0xf]
        %v662 = vunpack.c.l.b16 %v626
        %v663 = vunpack.c.l.b16 %v627
        %v664 = vpack.c.b16 %v663, %v662
        %v682 = vunpack.c.l.b16 %v644
        %v683 = vunpack.c.l.b16 %v645
        %v684 = vunpack.c.l.b16 %v646
        %v685 = vunpack.c.l.b16 %v647
        %v686 = vunpack.c.l.b16 %v648
        %v687 = vunpack.c.l.b16 %v649
        %v688 = vunpack.c.l.b16 %v650
        %v689 = vunpack.c.l.b16 %v651
        %v690 = vunpack.c.l.b16 %v652
        %v691 = vunpack.c.l.b16 %v653
        %v692 = vunpack.c.l.b16 %v654
        %v693 = vunpack.c.l.b16 %v655
        %v694 = vunpack.c.l.b16 %v656
        %v695 = vunpack.c.l.b16 %v657
        %v696 = vunpack.c.l.b16 %v658
        %v697 = vunpack.c.l.b16 %v659
        %v698 = vpack.c.b16 %v683, %v682
        %v699 = vpack.c.b16 %v685, %v684
        %v700 = vpack.c.b16 %v687, %v686
        %v701 = vpack.c.b16 %v689, %v688
        %v702 = vpack.c.b16 %v691, %v690
        %v703 = vpack.c.b16 %v693, %v692
        %v704 = vpack.c.b16 %v695, %v694
        %v705 = vpack.c.b16 %v697, %v696
        %714 = vmatprep.subr.bf16.mxu0 0
        %715 = vmatpush1.bf16.msra.mxu0 %v698
        %716 = vmatprep.subr.bf16.mxu0 0
        %717 = vmatpush1.bf16.msra.mxu0 %v699
        %718 = vmatprep.subr.bf16.mxu0 0
        %719 = vmatpush1.bf16.msra.mxu0 %v700
        %720 = vmatprep.subr.bf16.mxu0 0
        %721 = vmatpush1.bf16.msra.mxu0 %v701
        %722 = vmatprep.subr.bf16.mxu0 0
        %723 = vmatpush1.bf16.msra.mxu0 %v702
        %724 = vmatprep.subr.bf16.mxu0 0
        %725 = vmatpush1.bf16.msra.mxu0 %v703
        %726 = vmatprep.subr.bf16.mxu0 0
        %727 = vmatpush1.bf16.msra.mxu0 %v704
        %728 = vmatprep.subr.bf16.mxu0 0
        %729 = vmatpush1.bf16.msra.mxu0 %v705
        %730 = vmatprep.subr.bf16.mxu0 0
        %731 = vmatpush1.bf16.msra.mxu0 0
        %732 = vmatprep.subr.bf16.mxu0 0
        %733 = vmatpush1.bf16.msra.mxu0 0
        %734 = vmatprep.subr.bf16.mxu0 0
        %735 = vmatpush1.bf16.msra.mxu0 0
        %736 = vmatprep.subr.bf16.mxu0 0
        %737 = vmatpush1.bf16.msra.mxu0 0
        %738 = vmatprep.subr.bf16.mxu0 0
        %739 = vmatpush1.bf16.msra.mxu0 0
        %740 = vmatprep.subr.bf16.mxu0 0
        %741 = vmatpush1.bf16.msra.mxu0 0
        %742 = vmatprep.subr.bf16.mxu0 0
        %743 = vmatpush1.bf16.msra.mxu0 0
        %744 = vmatprep.subr.bf16.mxu0 0
        %745 = vmatpush1.bf16.msra.mxu0 0
        %746 = vmatprep.mubr.bf16.mxu0 0
        %747 = vmatmul.mubr.bf16.gmra.mrb[0].mxu0 %v664
        %v748 = vpop.f32.mrb[0].mxu0
        %v749 = vadd.f32 0.0, %v748
        %v750 = vpop.f32.mrb[0].mxu0
        %v751 = vpop.f32.mrb[0].mxu0
        %v752 = vadd.f32 0.0, %v751
        %v753 = vpop.f32.mrb[0].mxu0
        %754 = vdwg.mxu0
        %v755 = vpack.c.bf16 %v752, %v749
        %v756 = vld [vmem:[#allocation11] sm:$0xf]
        %v757 = vld [vmem:[#allocation11 + $0x4] sm:$0xf]
        %v758 = vld [vmem:[#allocation11 + $0x8] sm:$0xf]
        %v759 = vld [vmem:[#allocation11 + $0xc] sm:$0xf]
        %v760 = vld [vmem:[#allocation11 + $0x10] sm:$0xf]
        %v761 = vld [vmem:[#allocation11 + $0x14] sm:$0xf]
        %v762 = vld [vmem:[#allocation11 + $0x18] sm:$0xf]
        %v763 = vld [vmem:[#allocation11 + $0x1c] sm:$0xf]
        %v764 = vld [vmem:[#allocation11 + $0x20] sm:$0xf]
        %v765 = vld [vmem:[#allocation11 + $0x24] sm:$0xf]
        %v766 = vld [vmem:[#allocation11 + $0x28] sm:$0xf]
        %v767 = vld [vmem:[#allocation11 + $0x2c] sm:$0xf]
        %v768 = vld [vmem:[#allocation11 + $0x30] sm:$0xf]
        %v769 = vld [vmem:[#allocation11 + $0x34] sm:$0xf]
        %v770 = vld [vmem:[#allocation11 + $0x38] sm:$0xf]
        %v771 = vld [vmem:[#allocation11 + $0x3c] sm:$0xf]
        %v788 = vunpack.c.l.b16 %v756
        %v789 = vunpack.c.l.b16 %v757
        %v790 = vunpack.c.l.b16 %v758
        %v791 = vunpack.c.l.b16 %v759
        %v792 = vunpack.c.l.b16 %v760
        %v793 = vunpack.c.l.b16 %v761
        %v794 = vunpack.c.l.b16 %v762
        %v795 = vunpack.c.l.b16 %v763
        %v796 = vunpack.c.l.b16 %v764
        %v797 = vunpack.c.l.b16 %v765
        %v798 = vunpack.c.l.b16 %v766
        %v799 = vunpack.c.l.b16 %v767
        %v800 = vunpack.c.l.b16 %v768
        %v801 = vunpack.c.l.b16 %v769
        %v802 = vunpack.c.l.b16 %v770
        %v803 = vunpack.c.l.b16 %v771
        %v804 = vpack.c.b16 %v789, %v788
        %v805 = vpack.c.b16 %v791, %v790
        %v806 = vpack.c.b16 %v793, %v792
        %v807 = vpack.c.b16 %v795, %v794
        %v808 = vpack.c.b16 %v797, %v796
        %v809 = vpack.c.b16 %v799, %v798
        %v810 = vpack.c.b16 %v801, %v800
        %v811 = vpack.c.b16 %v803, %v802
        %820 = vmatprep.subr.bf16.mxu0 0
        %821 = vmatpush1.bf16.msra.mxu0 %v804
        %822 = vmatprep.subr.bf16.mxu0 0
        %823 = vmatpush1.bf16.msra.mxu0 %v805
        %824 = vmatprep.subr.bf16.mxu0 0
        %825 = vmatpush1.bf16.msra.mxu0 %v806
        %826 = vmatprep.subr.bf16.mxu0 0
        %827 = vmatpush1.bf16.msra.mxu0 %v807
        %828 = vmatprep.subr.bf16.mxu0 0
        %829 = vmatpush1.bf16.msra.mxu0 %v808
        %830 = vmatprep.subr.bf16.mxu0 0
        %831 = vmatpush1.bf16.msra.mxu0 %v809
        %832 = vmatprep.subr.bf16.mxu0 0
        %833 = vmatpush1.bf16.msra.mxu0 %v810
        %834 = vmatprep.subr.bf16.mxu0 0
        %835 = vmatpush1.bf16.msra.mxu0 %v811
        %836 = vmatprep.subr.bf16.mxu0 0
        %837 = vmatpush1.bf16.msra.mxu0 0
        %838 = vmatprep.subr.bf16.mxu0 0
        %839 = vmatpush1.bf16.msra.mxu0 0
        %840 = vmatprep.subr.bf16.mxu0 0
        %841 = vmatpush1.bf16.msra.mxu0 0
        %842 = vmatprep.subr.bf16.mxu0 0
        %843 = vmatpush1.bf16.msra.mxu0 0
        %844 = vmatprep.subr.bf16.mxu0 0
        %845 = vmatpush1.bf16.msra.mxu0 0
        %846 = vmatprep.subr.bf16.mxu0 0
        %847 = vmatpush1.bf16.msra.mxu0 0
        %848 = vmatprep.subr.bf16.mxu0 0
        %849 = vmatpush1.bf16.msra.mxu0 0
        %850 = vmatprep.subr.bf16.mxu0 0
        %851 = vmatpush1.bf16.msra.mxu0 0
        %852 = vmatprep.mubr.bf16.mxu0 0
        %853 = vmatmul.mubr.bf16.gmra.mrb[0].mxu0 %v664
        %v854 = vpop.f32.mrb[0].mxu0
        %v855 = vadd.f32 0.0, %v854
        %v856 = vpop.f32.mrb[0].mxu0
        %v857 = vpop.f32.mrb[0].mxu0
        %v858 = vadd.f32 0.0, %v857
        %v859 = vpop.f32.mrb[0].mxu0
        %860 = vdwg.mxu0
        %v861 = vpack.c.bf16 %v858, %v855
        %v870 = vunpack.c.l.b16 %v636
        %v871 = vunpack.c.l.b16 %v637
        %v872 = vunpack.c.l.b16 %v638
        %v873 = vunpack.c.l.b16 %v639
        %v874 = vunpack.c.l.b16 %v640
        %v875 = vunpack.c.l.b16 %v641
        %v876 = vunpack.c.l.b16 %v642
        %v877 = vunpack.c.l.b16 %v643
        %v878 = vpack.c.b16 %v871, %v870
        %v879 = vpack.c.b16 %v873, %v872
        %v880 = vpack.c.b16 %v875, %v874
        %v881 = vpack.c.b16 %v877, %v876
        %vm882 = vcmask 130048
        %v884 = vsel %vm882, %v878, 0
        %v887 = vsel %vm882, %v879, 0
        %v890 = vsel %vm882, %v880, 0
        %v893 = vsel %vm882, %v881, 0
        %895 = vmatprep.subr.bf16.mxu0 0
        %896 = vmatpush1.bf16.msra.mxu0 %v861
        %897 = vmatprep.subr.bf16.mxu0 0
        %898 = vmatpush1.bf16.msra.mxu0 0
        %899 = vmatprep.subr.bf16.mxu0 0
        %900 = vmatpush1.bf16.msra.mxu0 0
        %901 = vmatprep.subr.bf16.mxu0 0
        %902 = vmatpush1.bf16.msra.mxu0 0
        %903 = vmatprep.subr.bf16.mxu0 0
        %904 = vmatpush1.bf16.msra.mxu0 0
        %905 = vmatprep.subr.bf16.mxu0 0
        %906 = vmatpush1.bf16.msra.mxu0 0
        %907 = vmatprep.subr.bf16.mxu0 0
        %908 = vmatpush1.bf16.msra.mxu0 0
        %909 = vmatprep.subr.bf16.mxu0 0
        %910 = vmatpush1.bf16.msra.mxu0 0
        %911 = vmatprep.subr.bf16.mxu0 0
        %912 = vmatpush1.bf16.msra.mxu0 0
        %913 = vmatprep.subr.bf16.mxu0 0
        %914 = vmatpush1.bf16.msra.mxu0 0
        %915 = vmatprep.subr.bf16.mxu0 0
        %916 = vmatpush1.bf16.msra.mxu0 0
        %917 = vmatprep.subr.bf16.mxu0 0
        %918 = vmatpush1.bf16.msra.mxu0 0
        %919 = vmatprep.subr.bf16.mxu0 0
        %920 = vmatpush1.bf16.msra.mxu0 0
        %921 = vmatprep.subr.bf16.mxu0 0
        %922 = vmatpush1.bf16.msra.mxu0 0
        %923 = vmatprep.subr.bf16.mxu0 0
        %924 = vmatpush1.bf16.msra.mxu0 0
        %925 = vmatprep.subr.bf16.mxu0 0
        %926 = vmatpush1.bf16.msra.mxu0 0
        %927 = vmatprep.mubr.bf16.mxu0 0
        %928 = vmatmul.mubr.bf16.gmra.mrb[0].mxu0 %v884
        %v929 = vpop.f32.mrb[0].mxu0
        %v930 = vadd.f32 0.0, %v929
        %v931 = vpop.f32.mrb[0].mxu0
        %v932 = vpop.f32.mrb[0].mxu0
        %v933 = vadd.f32 0.0, %v932
        %v934 = vpop.f32.mrb[0].mxu0
        %935 = vmatprep.mubr.bf16.mxu0 0
        %936 = vmatmul.mubr.bf16.gmra.mrb[0].mxu0 %v887
        %v937 = vpop.f32.mrb[0].mxu0
        %v938 = vadd.f32 0.0, %v937
        %v939 = vpop.f32.mrb[0].mxu0
        %v940 = vpop.f32.mrb[0].mxu0
        %v941 = vadd.f32 0.0, %v940
        %v942 = vpop.f32.mrb[0].mxu0
        %943 = vmatprep.mubr.bf16.mxu0 0
        %944 = vmatmul.mubr.bf16.gmra.mrb[0].mxu0 %v890
        %v945 = vpop.f32.mrb[0].mxu0
        %v946 = vadd.f32 0.0, %v945
        %v947 = vpop.f32.mrb[0].mxu0
        %v948 = vpop.f32.mrb[0].mxu0
        %v949 = vadd.f32 0.0, %v948
        %v950 = vpop.f32.mrb[0].mxu0
        %951 = vmatprep.mubr.bf16.mxu0 0
        %952 = vmatmul.mubr.bf16.gmra.mrb[0].mxu0 %v893
        %v953 = vpop.f32.mrb[0].mxu0
        %v954 = vadd.f32 0.0, %v953
        %v955 = vpop.f32.mrb[0].mxu0
        %v956 = vpop.f32.mrb[0].mxu0
        %v957 = vadd.f32 0.0, %v956
        %v958 = vpop.f32.mrb[0].mxu0
        %959 = vdwg.mxu0
        %v968 = vunpack.c.l.b16 %v628
        %v969 = vunpack.c.l.b16 %v629
        %v970 = vunpack.c.l.b16 %v630
        %v971 = vunpack.c.l.b16 %v631
        %v972 = vunpack.c.l.b16 %v632
        %v973 = vunpack.c.l.b16 %v633
        %v974 = vunpack.c.l.b16 %v634
        %v975 = vunpack.c.l.b16 %v635
        %v976 = vpack.c.b16 %v969, %v968
        %v977 = vpack.c.b16 %v971, %v970
        %v978 = vpack.c.b16 %v973, %v972
        %v979 = vpack.c.b16 %v975, %v974
        %v981 = vsel %vm882, %v976, 0
        %v984 = vsel %vm882, %v977, 0
        %v987 = vsel %vm882, %v978, 0
        %v990 = vsel %vm882, %v979, 0
        %992 = vmatprep.subr.bf16.mxu0 0
        %993 = vmatpush1.bf16.msra.mxu0 %v755
        %994 = vmatprep.subr.bf16.mxu0 0
        %995 = vmatpush1.bf16.msra.mxu0 0
        %996 = vmatprep.subr.bf16.mxu0 0
        %997 = vmatpush1.bf16.msra.mxu0 0
        %998 = vmatprep.subr.bf16.mxu0 0
        %999 = vmatpush1.bf16.msra.mxu0 0
        %1000 = vmatprep.subr.bf16.mxu0 0
        %1001 = vmatpush1.bf16.msra.mxu0 0
        %1002 = vmatprep.subr.bf16.mxu0 0
        %1003 = vmatpush1.bf16.msra.mxu0 0
        %1004 = vmatprep.subr.bf16.mxu0 0
        %1005 = vmatpush1.bf16.msra.mxu0 0
        %1006 = vmatprep.subr.bf16.mxu0 0
        %1007 = vmatpush1.bf16.msra.mxu0 0
        %1008 = vmatprep.subr.bf16.mxu0 0
        %1009 = vmatpush1.bf16.msra.mxu0 0
        %1010 = vmatprep.subr.bf16.mxu0 0
        %1011 = vmatpush1.bf16.msra.mxu0 0
        %1012 = vmatprep.subr.bf16.mxu0 0
        %1013 = vmatpush1.bf16.msra.mxu0 0
        %1014 = vmatprep.subr.bf16.mxu0 0
        %1015 = vmatpush1.bf16.msra.mxu0 0
        %1016 = vmatprep.subr.bf16.mxu0 0
        %1017 = vmatpush1.bf16.msra.mxu0 0
        %1018 = vmatprep.subr.bf16.mxu0 0
        %1019 = vmatpush1.bf16.msra.mxu0 0
        %1020 = vmatprep.subr.bf16.mxu0 0
        %1021 = vmatpush1.bf16.msra.mxu0 0
        %1022 = vmatprep.subr.bf16.mxu0 0
        %1023 = vmatpush1.bf16.msra.mxu0 0
        %1024 = vmatprep.mubr.bf16.mxu0 0
        %1025 = vmatmul.mubr.bf16.gmra.mrb[0].mxu0 %v981
        %v1026 = vpop.f32.mrb[0].mxu0
        %v1027 = vadd.f32 %v930, %v1026
        %v1028 = vpop.f32.mrb[0].mxu0
        %v1029 = vpop.f32.mrb[0].mxu0
        %v1030 = vadd.f32 %v933, %v1029
        %v1031 = vpop.f32.mrb[0].mxu0
        %1032 = vmatprep.mubr.bf16.mxu0 0
        %1033 = vmatmul.mubr.bf16.gmra.mrb[0].mxu0 %v984
        %v1034 = vpop.f32.mrb[0].mxu0
        %v1035 = vadd.f32 %v938, %v1034
        %v1036 = vpop.f32.mrb[0].mxu0
        %v1037 = vpop.f32.mrb[0].mxu0
        %v1038 = vadd.f32 %v941, %v1037
        %v1039 = vpop.f32.mrb[0].mxu0
        %1040 = vmatprep.mubr.bf16.mxu0 0
        %1041 = vmatmul.mubr.bf16.gmra.mrb[0].mxu0 %v987
        %v1042 = vpop.f32.mrb[0].mxu0
        %v1043 = vadd.f32 %v946, %v1042
        %v1044 = vpop.f32.mrb[0].mxu0
        %v1045 = vpop.f32.mrb[0].mxu0
        %v1046 = vadd.f32 %v949, %v1045
        %v1047 = vpop.f32.mrb[0].mxu0
        %1048 = vmatprep.mubr.bf16.mxu0 0
        %1049 = vmatmul.mubr.bf16.gmra.mrb[0].mxu0 %v990
        %v1050 = vpop.f32.mrb[0].mxu0
        %v1051 = vadd.f32 %v954, %v1050
        %v1052 = vpop.f32.mrb[0].mxu0
        %v1053 = vpop.f32.mrb[0].mxu0
        %v1054 = vadd.f32 %v957, %v1053
        %v1055 = vpop.f32.mrb[0].mxu0
        %1056 = vdwg.mxu0
        %v1057 = vld [vmem:[#allocation12] sm:$0x1]
        %v1059 = vlaneseq
        %v1060 = vshrl.u32 %v1059, 7
        %v1061 = vsub.s32 0, %v1060
        %v1062 = vrot.slane %v1057, %v1061
        %v1064 = vadd.f32 %v1027, %v1062
        %v1065 = vadd.f32 %v1030, %v1062
        %v1066 = vadd.f32 %v1035, %v1062
        %v1067 = vadd.f32 %v1038, %v1062
        %v1068 = vadd.f32 %v1043, %v1062
        %v1069 = vadd.f32 %v1046, %v1062
        %v1070 = vadd.f32 %v1051, %v1062
        %v1071 = vadd.f32 %v1054, %v1062
        %v1072 = vmax.f32 %v1064, 0.0
        %v1073 = vmax.f32 %v1065, 0.0
        %v1074 = vmax.f32 %v1066, 0.0
        %v1075 = vmax.f32 %v1067, 0.0
        %v1076 = vmax.f32 %v1068, 0.0
        %v1077 = vmax.f32 %v1069, 0.0
        %v1078 = vmax.f32 %v1070, 0.0
        %v1079 = vmax.f32 %v1071, 0.0
        %v1080 = vpack.c.bf16 %v1073, %v1072
        %v1081 = vpack.c.bf16 %v1075, %v1074
        %v1082 = vpack.c.bf16 %v1077, %v1076
        %v1083 = vpack.c.bf16 %v1079, %v1078
        %v1084 = vld [vmem:[#allocation14] sm:$0xf]
        %v1085 = vld [vmem:[#allocation14 + $0x4] sm:$0xf]
        %v1086 = vld [vmem:[#allocation14 + $0x8] sm:$0xf]
        %v1087 = vld [vmem:[#allocation14 + $0xc] sm:$0xf]
        %v1088 = vld [vmem:[#allocation14 + $0x10] sm:$0xf]
        %v1089 = vld [vmem:[#allocation14 + $0x14] sm:$0xf]
        %v1090 = vld [vmem:[#allocation14 + $0x18] sm:$0xf]
        %v1091 = vld [vmem:[#allocation14 + $0x1c] sm:$0xf]
        %v1092 = vld [vmem:[#allocation14 + $0x20] sm:$0xf]
        %v1093 = vld [vmem:[#allocation14 + $0x24] sm:$0xf]
        %v1094 = vld [vmem:[#allocation14 + $0x28] sm:$0xf]
        %v1095 = vld [vmem:[#allocation14 + $0x2c] sm:$0xf]
        %v1096 = vld [vmem:[#allocation14 + $0x30] sm:$0xf]
        %v1097 = vld [vmem:[#allocation14 + $0x34] sm:$0xf]
        %v1098 = vld [vmem:[#allocation14 + $0x38] sm:$0xf]
        %v1099 = vld [vmem:[#allocation14 + $0x3c] sm:$0xf]
        %v1100 = vld [vmem:[#allocation15] sm:$0x1]
        %v1102 = vlaneseq
        %v1103 = vshrl.u32 %v1102, 7
        %v1104 = vsub.s32 0, %v1103
        %v1105 = vrot.slane %v1100, %v1104
        %v1123 = vunpack.c.l.b16 %v1084
        %v1124 = vunpack.c.l.b16 %v1085
        %v1125 = vunpack.c.l.b16 %v1086
        %v1126 = vunpack.c.l.b16 %v1087
        %v1127 = vunpack.c.l.b16 %v1088
        %v1128 = vunpack.c.l.b16 %v1089
        %v1129 = vunpack.c.l.b16 %v1090
        %v1130 = vunpack.c.l.b16 %v1091
        %v1131 = vunpack.c.l.b16 %v1092
        %v1132 = vunpack.c.l.b16 %v1093
        %v1133 = vunpack.c.l.b16 %v1094
        %v1134 = vunpack.c.l.b16 %v1095
        %v1135 = vunpack.c.l.b16 %v1096
        %v1136 = vunpack.c.l.b16 %v1097
        %v1137 = vunpack.c.l.b16 %v1098
        %v1138 = vunpack.c.l.b16 %v1099
        %v1139 = vpack.c.b16 %v1124, %v1123
        %v1140 = vpack.c.b16 %v1126, %v1125
        %v1141 = vpack.c.b16 %v1128, %v1127
        %v1142 = vpack.c.b16 %v1130, %v1129
        %v1143 = vpack.c.b16 %v1132, %v1131
        %v1144 = vpack.c.b16 %v1134, %v1133
        %v1145 = vpack.c.b16 %v1136, %v1135
        %v1146 = vpack.c.b16 %v1138, %v1137
        %1155 = vmatprep.subr.bf16.mxu0 0
        %1156 = vmatpush1.bf16.msra.mxu0 %v1139
        %1157 = vmatprep.subr.bf16.mxu0 0
        %1158 = vmatpush1.bf16.msra.mxu0 %v1140
        %1159 = vmatprep.subr.bf16.mxu0 0
        %1160 = vmatpush1.bf16.msra.mxu0 %v1141
        %1161 = vmatprep.subr.bf16.mxu0 0
        %1162 = vmatpush1.bf16.msra.mxu0 %v1142
        %1163 = vmatprep.subr.bf16.mxu0 0
        %1164 = vmatpush1.bf16.msra.mxu0 %v1143
        %1165 = vmatprep.subr.bf16.mxu0 0
        %1166 = vmatpush1.bf16.msra.mxu0 %v1144
        %1167 = vmatprep.subr.bf16.mxu0 0
        %1168 = vmatpush1.bf16.msra.mxu0 %v1145
        %1169 = vmatprep.subr.bf16.mxu0 0
        %1170 = vmatpush1.bf16.msra.mxu0 %v1146
        %1171 = vmatprep.subr.bf16.mxu0 0
        %1172 = vmatpush1.bf16.msra.mxu0 0
        %1173 = vmatprep.subr.bf16.mxu0 0
        %1174 = vmatpush1.bf16.msra.mxu0 0
        %1175 = vmatprep.subr.bf16.mxu0 0
        %1176 = vmatpush1.bf16.msra.mxu0 0
        %1177 = vmatprep.subr.bf16.mxu0 0
        %1178 = vmatpush1.bf16.msra.mxu0 0
        %1179 = vmatprep.subr.bf16.mxu0 0
        %1180 = vmatpush1.bf16.msra.mxu0 0
        %1181 = vmatprep.subr.bf16.mxu0 0
        %1182 = vmatpush1.bf16.msra.mxu0 0
        %1183 = vmatprep.subr.bf16.mxu0 0
        %1184 = vmatpush1.bf16.msra.mxu0 0
        %1185 = vmatprep.subr.bf16.mxu0 0
        %1186 = vmatpush1.bf16.msra.mxu0 0
        %1187 = vmatprep.mubr.bf16.mxu0 0
        %1188 = vmatmul.mubr.bf16.gmra.mrb[0].mxu0 %v1080
        %v1189 = vpop.f32.mrb[0].mxu0
        %v1190 = vadd.f32 %v1105, %v1189
        %v1191 = vpop.f32.mrb[0].mxu0
        %v1192 = vpop.f32.mrb[0].mxu0
        %v1193 = vadd.f32 %v1105, %v1192
        %v1194 = vpop.f32.mrb[0].mxu0
        %1195 = vmatprep.mubr.bf16.mxu0 0
        %1196 = vmatmul.mubr.bf16.gmra.mrb[0].mxu0 %v1081
        %v1197 = vpop.f32.mrb[0].mxu0
        %v1198 = vadd.f32 %v1105, %v1197
        %v1199 = vpop.f32.mrb[0].mxu0
        %v1200 = vpop.f32.mrb[0].mxu0
        %v1201 = vadd.f32 %v1105, %v1200
        %v1202 = vpop.f32.mrb[0].mxu0
        %1203 = vmatprep.mubr.bf16.mxu0 0
        %1204 = vmatmul.mubr.bf16.gmra.mrb[0].mxu0 %v1082
        %v1205 = vpop.f32.mrb[0].mxu0
        %v1206 = vadd.f32 %v1105, %v1205
        %v1207 = vpop.f32.mrb[0].mxu0
        %v1208 = vpop.f32.mrb[0].mxu0
        %v1209 = vadd.f32 %v1105, %v1208
        %v1210 = vpop.f32.mrb[0].mxu0
        %1211 = vmatprep.mubr.bf16.mxu0 0
        %1212 = vmatmul.mubr.bf16.gmra.mrb[0].mxu0 %v1083
        %v1213 = vpop.f32.mrb[0].mxu0
        %v1214 = vadd.f32 %v1105, %v1213
        %v1215 = vpop.f32.mrb[0].mxu0
        %v1216 = vpop.f32.mrb[0].mxu0
        %v1217 = vadd.f32 %v1105, %v1216
        %v1218 = vpop.f32.mrb[0].mxu0
        %1219 = vdwg.mxu0
        %v1220 = vmax.f32 %v1190, 0.0
        %v1221 = vmax.f32 %v1193, 0.0
        %v1222 = vmax.f32 %v1198, 0.0
        %v1223 = vmax.f32 %v1201, 0.0
        %v1224 = vmax.f32 %v1206, 0.0
        %v1225 = vmax.f32 %v1209, 0.0
        %v1226 = vmax.f32 %v1214, 0.0
        %v1227 = vmax.f32 %v1217, 0.0
        %v1228 = vpack.c.bf16 %v1221, %v1220
        %v1229 = vpack.c.bf16 %v1223, %v1222
        %v1230 = vpack.c.bf16 %v1225, %v1224
        %v1231 = vpack.c.bf16 %v1227, %v1226
        %1236 = vxpose.xlu0.c.b16.start [1/8] %v976, 128
        %1237 = vxpose.xlu0.c.b16.cont [2/8] %v977, 128
        %1238 = vxpose.xlu0.c.b16.cont [3/8] %v978, 128
        %1239 = vxpose.xlu0.c.b16.cont [4/8] %v979, 128
        %1240 = vxpose.xlu0.c.b16.cont [5/8] 0, 128
        %1241 = vxpose.xlu0.c.b16.cont [6/8] 0, 128
        %1242 = vxpose.xlu0.c.b16.cont [7/8] 0, 128
        %1243 = vxpose.xlu0.c.b16.end [8/8] 0, 128
        %v1244 = vpop.trf.xlu0
        %v1245 = vpop.trf.xlu0
        %v1246 = vpop.trf.xlu0
        %v1247 = vpop.trf.xlu0
        %v1248 = vpop.trf.xlu0
        %v1249 = vpop.trf.xlu0
        %v1250 = vpop.trf.xlu0
        %v1251 = vpop.trf.xlu0
        %vm1252 = vcmask 523264
        %v1254 = vsel %vm1252, %v1244, 0
        %1256 = vmatprep.subr.bf16.mxu0 0
        %1257 = vmatpush1.bf16.msra.mxu0 %v1228
        %1258 = vmatprep.subr.bf16.mxu0 0
        %1259 = vmatpush1.bf16.msra.mxu0 %v1229
        %1260 = vmatprep.subr.bf16.mxu0 0
        %1261 = vmatpush1.bf16.msra.mxu0 %v1230
        %1262 = vmatprep.subr.bf16.mxu0 0
        %1263 = vmatpush1.bf16.msra.mxu0 %v1231
        %1264 = vmatprep.subr.bf16.mxu0 0
        %1265 = vmatpush1.bf16.msra.mxu0 0
        %1266 = vmatprep.subr.bf16.mxu0 0
        %1267 = vmatpush1.bf16.msra.mxu0 0
        %1268 = vmatprep.subr.bf16.mxu0 0
        %1269 = vmatpush1.bf16.msra.mxu0 0
        %1270 = vmatprep.subr.bf16.mxu0 0
        %1271 = vmatpush1.bf16.msra.mxu0 0
        %1272 = vmatprep.subr.bf16.mxu0 0
        %1273 = vmatpush1.bf16.msra.mxu0 0
        %1274 = vmatprep.subr.bf16.mxu0 0
        %1275 = vmatpush1.bf16.msra.mxu0 0
        %1276 = vmatprep.subr.bf16.mxu0 0
        %1277 = vmatpush1.bf16.msra.mxu0 0
        %1278 = vmatprep.subr.bf16.mxu0 0
        %1279 = vmatpush1.bf16.msra.mxu0 0
        %1280 = vmatprep.subr.bf16.mxu0 0
        %1281 = vmatpush1.bf16.msra.mxu0 0
        %1282 = vmatprep.subr.bf16.mxu0 0
        %1283 = vmatpush1.bf16.msra.mxu0 0
        %1284 = vmatprep.subr.bf16.mxu0 0
        %1285 = vmatpush1.bf16.msra.mxu0 0
        %1286 = vmatprep.subr.bf16.mxu0 0
        %1287 = vmatpush1.bf16.msra.mxu0 0
        %1288 = vmatprep.mubr.bf16.mxu0 0
        %1289 = vmatmul.mubr.bf16.gmra.mrb[0].mxu0 %v1254
        %v1290 = vpop.f32.mrb[0].mxu0
        %v1291 = vadd.f32 0.0, %v1290
        %v1292 = vpop.f32.mrb[0].mxu0
        %v1293 = vpop.f32.mrb[0].mxu0
        %v1294 = vadd.f32 0.0, %v1293
        %v1295 = vpop.f32.mrb[0].mxu0
        %1296 = vdwg.mxu0
        %1297 = vst [vmem:[#allocation2] sm:$0xff] %v1291
        %1298 = vst [vmem:[#allocation2 + $0x8] sm:$0xff] %v1294
        %v1299 = vld [vmem:[#allocation17] sm:$0xf]
        %v1300 = vld [vmem:[#allocation17 + $0x4] sm:$0xf]
        %v1301 = vld [vmem:[#allocation17 + $0x8] sm:$0xf]
        %v1302 = vld [vmem:[#allocation17 + $0xc] sm:$0xf]
        %v1303 = vld [vmem:[#allocation17 + $0x10] sm:$0xf]
        %v1304 = vld [vmem:[#allocation17 + $0x14] sm:$0xf]
        %v1305 = vld [vmem:[#allocation17 + $0x18] sm:$0xf]
        %v1306 = vld [vmem:[#allocation17 + $0x1c] sm:$0xf]
        %v1307 = vld [vmem:[#allocation17 + $0x20] sm:$0xf]
        %v1308 = vld [vmem:[#allocation17 + $0x24] sm:$0xf]
        %v1309 = vld [vmem:[#allocation17 + $0x28] sm:$0xf]
        %v1310 = vld [vmem:[#allocation17 + $0x2c] sm:$0xf]
        %v1311 = vld [vmem:[#allocation17 + $0x30] sm:$0xf]
        %v1312 = vld [vmem:[#allocation17 + $0x34] sm:$0xf]
        %v1313 = vld [vmem:[#allocation17 + $0x38] sm:$0xf]
        %v1314 = vld [vmem:[#allocation17 + $0x3c] sm:$0xf]
        %v1315 = vld [vmem:[#allocation2] sm:$0xff]
        %v1316 = vld [vmem:[#allocation2 + $0x8] sm:$0xff]
        %v1317 = vpack.c.bf16 %v1316, %v1315
        %v1318 = vld [vmem:[#allocation18] sm:$0xf]
        %v1319 = vld [vmem:[#allocation18 + $0x4] sm:$0xf]
        %v1320 = vld [vmem:[#allocation18 + $0x8] sm:$0xf]
        %v1321 = vld [vmem:[#allocation18 + $0xc] sm:$0xf]
        %v1322 = vld [vmem:[#allocation18 + $0x10] sm:$0xf]
        %v1323 = vld [vmem:[#allocation18 + $0x14] sm:$0xf]
        %v1324 = vld [vmem:[#allocation18 + $0x18] sm:$0xf]
        %v1325 = vld [vmem:[#allocation18 + $0x1c] sm:$0xf]
        %v1326 = vld [vmem:[#allocation18 + $0x20] sm:$0xf]
        %v1327 = vld [vmem:[#allocation18 + $0x24] sm:$0xf]
        %v1328 = vld [vmem:[#allocation18 + $0x28] sm:$0xf]
        %v1329 = vld [vmem:[#allocation18 + $0x2c] sm:$0xf]
        %v1330 = vld [vmem:[#allocation18 + $0x30] sm:$0xf]
        %v1331 = vld [vmem:[#allocation18 + $0x34] sm:$0xf]
        %v1332 = vld [vmem:[#allocation18 + $0x38] sm:$0xf]
        %v1333 = vld [vmem:[#allocation18 + $0x3c] sm:$0xf]
        %v1350 = vunpack.c.l.b16 %v1318
        %v1351 = vunpack.c.l.b16 %v1319
        %v1352 = vunpack.c.l.b16 %v1320
        %v1353 = vunpack.c.l.b16 %v1321
        %v1354 = vunpack.c.l.b16 %v1322
        %v1355 = vunpack.c.l.b16 %v1323
        %v1356 = vunpack.c.l.b16 %v1324
        %v1357 = vunpack.c.l.b16 %v1325
        %v1358 = vunpack.c.l.b16 %v1326
        %v1359 = vunpack.c.l.b16 %v1327
        %v1360 = vunpack.c.l.b16 %v1328
        %v1361 = vunpack.c.l.b16 %v1329
        %v1362 = vunpack.c.l.b16 %v1330
        %v1363 = vunpack.c.l.b16 %v1331
        %v1364 = vunpack.c.l.b16 %v1332
        %v1365 = vunpack.c.l.b16 %v1333
        %v1366 = vpack.c.b16 %v1351, %v1350
        %v1367 = vpack.c.b16 %v1353, %v1352
        %v1368 = vpack.c.b16 %v1355, %v1354
        %v1369 = vpack.c.b16 %v1357, %v1356
        %v1370 = vpack.c.b16 %v1359, %v1358
        %v1371 = vpack.c.b16 %v1361, %v1360
        %v1372 = vpack.c.b16 %v1363, %v1362
        %v1373 = vpack.c.b16 %v1365, %v1364
        %1382 = vmatprep.subr.bf16.mxu0 0
        %1383 = vmatpush1.bf16.msra.mxu0 %v1366
        %1384 = vmatprep.subr.bf16.mxu0 0
        %1385 = vmatpush1.bf16.msra.mxu0 %v1367
        %1386 = vmatprep.subr.bf16.mxu0 0
        %1387 = vmatpush1.bf16.msra.mxu0 %v1368
        %1388 = vmatprep.subr.bf16.mxu0 0
        %1389 = vmatpush1.bf16.msra.mxu0 %v1369
        %1390 = vmatprep.subr.bf16.mxu0 0
        %1391 = vmatpush1.bf16.msra.mxu0 %v1370
        %1392 = vmatprep.subr.bf16.mxu0 0
        %1393 = vmatpush1.bf16.msra.mxu0 %v1371
        %1394 = vmatprep.subr.bf16.mxu0 0
        %1395 = vmatpush1.bf16.msra.mxu0 %v1372
        %1396 = vmatprep.subr.bf16.mxu0 0
        %1397 = vmatpush1.bf16.msra.mxu0 %v1373
        %1398 = vmatprep.subr.bf16.mxu0 0
        %1399 = vmatpush1.bf16.msra.mxu0 0
        %1400 = vmatprep.subr.bf16.mxu0 0
        %1401 = vmatpush1.bf16.msra.mxu0 0
        %1402 = vmatprep.subr.bf16.mxu0 0
        %1403 = vmatpush1.bf16.msra.mxu0 0
        %1404 = vmatprep.subr.bf16.mxu0 0
        %1405 = vmatpush1.bf16.msra.mxu0 0
        %1406 = vmatprep.subr.bf16.mxu0 0
        %1407 = vmatpush1.bf16.msra.mxu0 0
        %1408 = vmatprep.subr.bf16.mxu0 0
        %1409 = vmatpush1.bf16.msra.mxu0 0
        %1410 = vmatprep.subr.bf16.mxu0 0
        %1411 = vmatpush1.bf16.msra.mxu0 0
        %1412 = vmatprep.subr.bf16.mxu0 0
        %1413 = vmatpush1.bf16.msra.mxu0 0
        %1414 = vmatprep.mubr.bf16.mxu0 0
        %1415 = vmatmul.mubr.bf16.gmra.mrb[0].mxu0 %v1317
        %v1416 = vpop.f32.mrb[0].mxu0
        %v1417 = vadd.f32 0.0, %v1416
        %v1418 = vpop.f32.mrb[0].mxu0
        %v1419 = vpop.f32.mrb[0].mxu0
        %v1420 = vadd.f32 0.0, %v1419
        %v1421 = vpop.f32.mrb[0].mxu0
        %1422 = vdwg.mxu0
        %v1439 = vunpack.c.l.b16 %v1299
        %v1440 = vunpack.c.l.b16 %v1300
        %v1441 = vunpack.c.l.b16 %v1301
        %v1442 = vunpack.c.l.b16 %v1302
        %v1443 = vunpack.c.l.b16 %v1303
        %v1444 = vunpack.c.l.b16 %v1304
        %v1445 = vunpack.c.l.b16 %v1305
        %v1446 = vunpack.c.l.b16 %v1306
        %v1447 = vunpack.c.l.b16 %v1307
        %v1448 = vunpack.c.l.b16 %v1308
        %v1449 = vunpack.c.l.b16 %v1309
        %v1450 = vunpack.c.l.b16 %v1310
        %v1451 = vunpack.c.l.b16 %v1311
        %v1452 = vunpack.c.l.b16 %v1312
        %v1453 = vunpack.c.l.b16 %v1313
        %v1454 = vunpack.c.l.b16 %v1314
        %v1455 = vpack.c.b16 %v1440, %v1439
        %v1456 = vpack.c.b16 %v1442, %v1441
        %v1457 = vpack.c.b16 %v1444, %v1443
        %v1458 = vpack.c.b16 %v1446, %v1445
        %v1459 = vpack.c.b16 %v1448, %v1447
        %v1460 = vpack.c.b16 %v1450, %v1449
        %v1461 = vpack.c.b16 %v1452, %v1451
        %v1462 = vpack.c.b16 %v1454, %v1453
        %1471 = vmatprep.subr.bf16.mxu0 0
        %1472 = vmatpush1.bf16.msra.mxu0 %v1455
        %1473 = vmatprep.subr.bf16.mxu0 0
        %1474 = vmatpush1.bf16.msra.mxu0 %v1456
        %1475 = vmatprep.subr.bf16.mxu0 0
        %1476 = vmatpush1.bf16.msra.mxu0 %v1457
        %1477 = vmatprep.subr.bf16.mxu0 0
        %1478 = vmatpush1.bf16.msra.mxu0 %v1458
        %1479 = vmatprep.subr.bf16.mxu0 0
        %1480 = vmatpush1.bf16.msra.mxu0 %v1459
        %1481 = vmatprep.subr.bf16.mxu0 0
        %1482 = vmatpush1.bf16.msra.mxu0 %v1460
        %1483 = vmatprep.subr.bf16.mxu0 0
        %1484 = vmatpush1.bf16.msra.mxu0 %v1461
        %1485 = vmatprep.subr.bf16.mxu0 0
        %1486 = vmatpush1.bf16.msra.mxu0 %v1462
        %1487 = vmatprep.subr.bf16.mxu0 0
        %1488 = vmatpush1.bf16.msra.mxu0 0
        %1489 = vmatprep.subr.bf16.mxu0 0
        %1490 = vmatpush1.bf16.msra.mxu0 0
        %1491 = vmatprep.subr.bf16.mxu0 0
        %1492 = vmatpush1.bf16.msra.mxu0 0
        %1493 = vmatprep.subr.bf16.mxu0 0
        %1494 = vmatpush1.bf16.msra.mxu0 0
        %1495 = vmatprep.subr.bf16.mxu0 0
        %1496 = vmatpush1.bf16.msra.mxu0 0
        %1497 = vmatprep.subr.bf16.mxu0 0
        %1498 = vmatpush1.bf16.msra.mxu0 0
        %1499 = vmatprep.subr.bf16.mxu0 0
        %1500 = vmatpush1.bf16.msra.mxu0 0
        %1501 = vmatprep.subr.bf16.mxu0 0
        %1502 = vmatpush1.bf16.msra.mxu0 0
        %1503 = vmatprep.mubr.bf16.mxu0 0
        %1504 = vmatmul.mubr.bf16.gmra.mrb[0].mxu0 %v664
        %v1505 = vpop.f32.mrb[0].mxu0
        %v1506 = vadd.f32 %v1417, %v1505
        %v1507 = vpop.f32.mrb[0].mxu0
        %v1508 = vpop.f32.mrb[0].mxu0
        %v1509 = vadd.f32 %v1420, %v1508
        %v1510 = vpop.f32.mrb[0].mxu0
        %1511 = vdwg.mxu0
        %v1512 = vld [vmem:[#allocation20] sm:$0x1]
        %v1514 = vlaneseq
        %v1515 = vshrl.u32 %v1514, 7
        %v1516 = vsub.s32 0, %v1515
        %v1517 = vrot.slane %v1512, %v1516
        %v1519 = vadd.f32 %v1506, %v1517
        %v1520 = vadd.f32 %v1509, %v1517
        %v1521 = vmax.f32 %v1519, 0.0
        %v1522 = vmax.f32 %v1520, 0.0
        %v1523 = vpack.c.bf16 %v1522, %v1521
        %v1524 = vld [vmem:[#allocation21] sm:$0xf]
        %v1525 = vld [vmem:[#allocation21 + $0x4] sm:$0xf]
        %v1526 = vld [vmem:[#allocation21 + $0x8] sm:$0xf]
        %v1527 = vld [vmem:[#allocation21 + $0xc] sm:$0xf]
        %v1528 = vld [vmem:[#allocation21 + $0x10] sm:$0xf]
        %v1529 = vld [vmem:[#allocation21 + $0x14] sm:$0xf]
        %v1530 = vld [vmem:[#allocation21 + $0x18] sm:$0xf]
        %v1531 = vld [vmem:[#allocation21 + $0x1c] sm:$0xf]
        %v1532 = vld [vmem:[#allocation21 + $0x20] sm:$0xf]
        %v1533 = vld [vmem:[#allocation21 + $0x24] sm:$0xf]
        %v1534 = vld [vmem:[#allocation21 + $0x28] sm:$0xf]
        %v1535 = vld [vmem:[#allocation21 + $0x2c] sm:$0xf]
        %v1536 = vld [vmem:[#allocation21 + $0x30] sm:$0xf]
        %v1537 = vld [vmem:[#allocation21 + $0x34] sm:$0xf]
        %v1538 = vld [vmem:[#allocation21 + $0x38] sm:$0xf]
        %v1539 = vld [vmem:[#allocation21 + $0x3c] sm:$0xf]
        %v1540 = vld [vmem:[#allocation23] sm:$0x1]
        %v1542 = vlaneseq
        %v1543 = vshrl.u32 %v1542, 7
        %v1544 = vsub.s32 0, %v1543
        %v1545 = vrot.slane %v1540, %v1544
        %v1563 = vunpack.c.l.b16 %v1524
        %v1564 = vunpack.c.l.b16 %v1525
        %v1565 = vunpack.c.l.b16 %v1526
        %v1566 = vunpack.c.l.b16 %v1527
        %v1567 = vunpack.c.l.b16 %v1528
        %v1568 = vunpack.c.l.b16 %v1529
        %v1569 = vunpack.c.l.b16 %v1530
        %v1570 = vunpack.c.l.b16 %v1531
        %v1571 = vunpack.c.l.b16 %v1532
        %v1572 = vunpack.c.l.b16 %v1533
        %v1573 = vunpack.c.l.b16 %v1534
        %v1574 = vunpack.c.l.b16 %v1535
        %v1575 = vunpack.c.l.b16 %v1536
        %v1576 = vunpack.c.l.b16 %v1537
        %v1577 = vunpack.c.l.b16 %v1538
        %v1578 = vunpack.c.l.b16 %v1539
        %v1579 = vpack.c.b16 %v1564, %v1563
        %v1580 = vpack.c.b16 %v1566, %v1565
        %v1581 = vpack.c.b16 %v1568, %v1567
        %v1582 = vpack.c.b16 %v1570, %v1569
        %v1583 = vpack.c.b16 %v1572, %v1571
        %v1584 = vpack.c.b16 %v1574, %v1573
        %v1585 = vpack.c.b16 %v1576, %v1575
        %v1586 = vpack.c.b16 %v1578, %v1577
        %1595 = vmatprep.subr.bf16.mxu0 0
        %1596 = vmatpush1.bf16.msra.mxu0 %v1579
        %1597 = vmatprep.subr.bf16.mxu0 0
        %1598 = vmatpush1.bf16.msra.mxu0 %v1580
        %1599 = vmatprep.subr.bf16.mxu0 0
        %1600 = vmatpush1.bf16.msra.mxu0 %v1581
        %1601 = vmatprep.subr.bf16.mxu0 0
        %1602 = vmatpush1.bf16.msra.mxu0 %v1582
        %1603 = vmatprep.subr.bf16.mxu0 0
        %1604 = vmatpush1.bf16.msra.mxu0 %v1583
        %1605 = vmatprep.subr.bf16.mxu0 0
        %1606 = vmatpush1.bf16.msra.mxu0 %v1584
        %1607 = vmatprep.subr.bf16.mxu0 0
        %1608 = vmatpush1.bf16.msra.mxu0 %v1585
        %1609 = vmatprep.subr.bf16.mxu0 0
        %1610 = vmatpush1.bf16.msra.mxu0 %v1586
        %1611 = vmatprep.subr.bf16.mxu0 0
        %1612 = vmatpush1.bf16.msra.mxu0 0
        %1613 = vmatprep.subr.bf16.mxu0 0
        %1614 = vmatpush1.bf16.msra.mxu0 0
        %1615 = vmatprep.subr.bf16.mxu0 0
        %1616 = vmatpush1.bf16.msra.mxu0 0
        %1617 = vmatprep.subr.bf16.mxu0 0
        %1618 = vmatpush1.bf16.msra.mxu0 0
        %1619 = vmatprep.subr.bf16.mxu0 0
        %1620 = vmatpush1.bf16.msra.mxu0 0
        %1621 = vmatprep.subr.bf16.mxu0 0
        %1622 = vmatpush1.bf16.msra.mxu0 0
        %1623 = vmatprep.subr.bf16.mxu0 0
        %1624 = vmatpush1.bf16.msra.mxu0 0
        %1625 = vmatprep.subr.bf16.mxu0 0
        %1626 = vmatpush1.bf16.msra.mxu0 0
        %1627 = vmatprep.mubr.bf16.mxu0 0
        %1628 = vmatmul.mubr.bf16.gmra.mrb[0].mxu0 %v1523
        %v1629 = vpop.f32.mrb[0].mxu0
        %v1630 = vadd.f32 %v1545, %v1629
        %v1631 = vpop.f32.mrb[0].mxu0
        %v1632 = vpop.f32.mrb[0].mxu0
        %v1633 = vadd.f32 %v1545, %v1632
        %v1634 = vpop.f32.mrb[0].mxu0
        %1635 = vdwg.mxu0
        %1636 = vst [vmem:[%s624] sm:$0xff] %v1630
        %1637 = vst [vmem:[%s624 + $0x8] sm:$0xff] %v1633
        %s1638 = sand.u32 %s322, 1
        %s1639 = scalar_lea.sflag [#allocation5], %s1638
        %s1640 = sand.u32 %s322, 1
        %s1641 = smul.addr %s1640, 16
        %s1642 = scalar_lea.vmem [#allocation24], %s1641
        // Predicated region
        $region125: #{tpu_custom_call.1} parent=71 // pred_check
          %p1643 = pneg %p332
        $region126: #{tpu_custom_call.1} parent=71 // pred_check_branch
          %1645 = sbr.rel (%p1643) target = $region128
        $region127: #{tpu_custom_call.1} parent=71 // pred_region
          %s1647 = ssub.s32 256, 256
          %1648 = vsyncadd %s1639, %s1647
          %s1649 = smul.addr %s36, 2
          %s1650 = smul.addr %s1649, 128
          %s1651 = scalar_lea.hbm %s13, %s1650
          %s1652 = sshll.u32 %s1642, 4
          %s1653 = int_to_ptr.vmem [resolvable:$true] %s1652
          %1658 = dma.vmem_to_hbm [thread:$0]  %s1653, 256, %s1651, %s1639, 128, 128, 8
        $region128: #{tpu_custom_call.1} parent=71 // pred_fallthru
          _
      $region72: #{tpu_custom_call.1} parent=5 // pred_fallthru
        _
      %p1659 = scmp.le.s32.totalorder 2, %s31
      // Predicated region
      $region129: #{tpu_custom_call.1} parent=5 // pred_check
        %p1660 = pneg %p1659
      $region130: #{tpu_custom_call.1} parent=5 // pred_check_branch
        %1662 = sbr.rel (%p1660) target = $region132
      $region131: #{tpu_custom_call.1} parent=5 // pred_region
        %s1663 = ssub.s32 %s31, 2
        // Predicated region
        $region133: #{tpu_custom_call.1} parent=131 // pred_check
          %p1664 = pneg %p338
        $region134: #{tpu_custom_call.1} parent=131 // pred_check_branch
          %1666 = sbr.rel (%p1664) target = $region136
        $region135: #{tpu_custom_call.1} parent=131 // pred_region
          %s1667 = sand.u32 %s323, 1
          %s1668 = scalar_lea.sflag [#allocation5], %s1667
          %s1669 = sand.u32 %s323, 1
          %s1670 = smul.addr %s1669, 16
          %s1671 = scalar_lea.vmem [#allocation24], %s1670
          %1672 = dma.done %s1668, 256
        $region136: #{tpu_custom_call.1} parent=131 // pred_fallthru
          _
      $region132: #{tpu_custom_call.1} parent=5 // pred_fallthru
        _
    $region6: #{tpu_custom_call.1} parent=1 // loop_footer
      %s35 = sadd.s32 1, %s31
    $region7: #{tpu_custom_call.1} parent=1 // loop_footer_branch
      %30 = sbr.rel target = $region3
    $region8: #{tpu_custom_call.1} parent=1 // loop_exit
      _
    %1673 = vsyncpa [#allocation4], 1
    %s1674 = scalar_lea.sflag [#allocation4], 1
    %1675 = vsyncpa %s1674, 1
    %1676 = vsyncpa [#allocation7], 1
    %1677 = vsyncpa [#allocation10], 1
    %1678 = vsyncpa [#allocation13], 1
    %1679 = vsyncpa [#allocation16], 1
    %1680 = vsyncpa [#allocation19], 1
    %1681 = vsyncpa [#allocation22], 1
    %1682 = vsyncpa [#allocation5], 1
    %s1683 = scalar_lea.sflag [#allocation5], 1
    %1684 = vsyncpa %s1683, 1

</llo_original>
